<compile_context>
chip_gen: v5e
topology: v5e:2x2
jax: 0.10.0
libtpu: 0.0.40
codegen_flags: <defaults>
</compile_context>

<pallas_src>
import functools
import math

import jax
import jax.numpy as jnp
from jax import lax
from jax.experimental import pallas as pl
from jax.experimental.pallas import tpu as pltpu

LN_EPS = 1e-5  # PyTorch nn.LayerNorm default


def hybrid_kernel(x_ref, outs_ref, wp_ref, out_ref, *,
                  num_models, window_size, feature_dim, block_b, mxu_dtype):
    M, W, F, Bb = num_models, window_size, feature_dim, block_b
    MF = M * F

    # Packed constant buffer layout (rows):
    #   [0,     MF)        : P_m   stacked  (score projection, scale folded in)
    #   [MF,    2MF)       : Wv_m  stacked
    #   [2MF,   2MF + W)   : LayerNorm gamma
    #   [2MF+W, 2MF + 2W)  : LayerNorm beta
    gamma = wp_ref[2 * MF:2 * MF + W, :]                     # (W, F) f32
    beta = wp_ref[2 * MF + W:2 * MF + 2 * W, :]              # (W, F) f32
    gmean = jnp.mean(gamma, axis=0, keepdims=True)           # (1, F)
    bmean = jnp.mean(beta, axis=0, keepdims=True)            # (1, F)

    x_rows = x_ref[...]                                      # (Bb*W, F), mxu dtype

    # means[m][b] : (1, F) f32 — window-mean of the LayerNorm'd attention output.
    means = [[None] * Bb for _ in range(M)]

    for m in range(M):
        p_m = wp_ref[m * F:(m + 1) * F, :].astype(mxu_dtype)            # (F, F)
        wv_m = wp_ref[MF + m * F:MF + (m + 1) * F, :].astype(mxu_dtype)  # (F, F)
        outs_m = outs_ref[m]                                            # (Bb*W, F)

        # Projections on the merged (Bb*W, F) LHS.
        xp = jnp.dot(x_rows, p_m, preferred_element_type=jnp.float32)      # (Bb*W, F)
        v_all = jnp.dot(outs_m, wv_m, preferred_element_type=jnp.float32)  # (Bb*W, F)
        xp_m = xp.astype(mxu_dtype)

        for b in range(Bb):
            lo, hi = b * W, (b + 1) * W
            # scores = q k^T == (x P_m) out_m^T ; no explicit transpose of k.
            s = lax.dot_general(xp_m[lo:hi], outs_m[lo:hi],
                                (((1,), (1,)), ((), ())),
                                preferred_element_type=jnp.float32)      # (W, W)
            e = jnp.exp(s - jnp.max(s, axis=-1, keepdims=True))
            p = e * pl.reciprocal(jnp.sum(e, axis=-1, keepdims=True),
                                  approx=True)
            a = jnp.dot(p.astype(mxu_dtype),
                        v_all[lo:hi].astype(mxu_dtype),
                        preferred_element_type=jnp.float32)              # (W, F)

            # Dropout -> identity in eval mode.
            # LayerNorm over normalized_shape=[W, F]; only mean over the window
            # of the LN output is needed downstream, so fold it analytically:
            #   mean_w(LN(a)) = r * (mean_w(a*gamma) - mu*mean_w(gamma)) + mean_w(beta)
            mu = jnp.mean(a)
            var = jnp.mean(a * a) - mu * mu                  # one-pass stats
            r = lax.rsqrt(var + LN_EPS)
            ag = jnp.mean(a * gamma, axis=0, keepdims=True)  # (1, F)
            means[m][b] = r * (ag - mu * gmean) + bmean      # (1, F)

    # Model-axis softmax of the means + weighted sum of the sub-model outputs.
    for b in range(Bb):
        lo, hi = b * W, (b + 1) * W
        mx = means[0][b]
        for m in range(1, M):
            mx = jnp.maximum(mx, means[m][b])
        ex = [jnp.exp(means[m][b] - mx) for m in range(M)]
        den = ex[0]
        for m in range(1, M):
            den = den + ex[m]
        inv = pl.reciprocal(den, approx=True)                # (1, F)

        acc = (ex[0] * inv) * outs_ref[0, lo:hi, :].astype(jnp.float32)
        for m in range(1, M):
            acc = acc + (ex[m] * inv) * outs_ref[m, lo:hi, :].astype(jnp.float32)
        out_ref[lo:hi, :] = acc.astype(out_ref.dtype)


def hybrid_forward(x, model_outs, wq, wk, wv, ln_g, ln_b, *,
                   block_b=None, mxu_dtype=jnp.float32):
    """x: (B, W, F); model_outs: (M, B, W, F) (frozen sub-model outputs)."""
    B, W, F = x.shape
    M = model_outs.shape[0]
    assert model_outs.shape == (M, B, W, F)

    if block_b is None:
        block_b = 1
        for cand in (8, 4, 2, 1):
            if B % cand == 0:
                block_b = cand
                break
    assert B % block_b == 0, "batch must be divisible by the batch block"
    nb = B // block_b
    rows = block_b * W

    # One-time (trace/compile-time) weight packing — free.
    inv_sqrt_f = 1.0 / math.sqrt(F)
    p_fused = jnp.einsum("mij,mkj->mik", wq, wk) * inv_sqrt_f          # (M, F, F)
    # Single packed constant buffer -> one constant DMA stream.
    wp = jnp.concatenate(
        [p_fused.reshape(M * F, F).astype(jnp.float32),
         wv.reshape(M * F, F).astype(jnp.float32),
         ln_g.astype(jnp.float32),
         ln_b.astype(jnp.float32)], axis=0)                             # (2MF+2W, F)

    # Free contiguous-merge reshapes (no HBM copies); optional bf16 cast for MXU.
    x2 = x.reshape(B * W, F).astype(mxu_dtype)
    outs2 = model_outs.reshape(M, B * W, F).astype(mxu_dtype)

    kernel = functools.partial(hybrid_kernel, num_models=M, window_size=W,
                               feature_dim=F, block_b=block_b,
                               mxu_dtype=mxu_dtype)
    out = pl.pallas_call(
        kernel,
        out_shape=jax.ShapeDtypeStruct((B * W, F), jnp.float32),
        grid_spec=pltpu.PrefetchScalarGridSpec(
            num_scalar_prefetch=0,
            grid=(nb,),
            in_specs=[
                pl.BlockSpec((rows, F), lambda b: (b, 0)),            # x
                pl.BlockSpec((M, rows, F), lambda b: (0, b, 0)),      # model outs
                pl.BlockSpec((2 * M * F + 2 * W, F), lambda b: (0, 0)),  # constants
            ],
            out_specs=pl.BlockSpec((rows, F), lambda b: (b, 0)),
        ),
        compiler_params=pltpu.CompilerParams(
            dimension_semantics=("parallel",)),
    )(x2, outs2, wp)
    return out.reshape(B, W, F)


def reference_forward(x, model_outs, wq, wk, wv, ln_g, ln_b):
    """Pure-JAX reference (mirrors the PyTorch forward). model_outs: (M,B,W,F)."""
    B, W, F = x.shape
    M = model_outs.shape[0]
    attn_means = []
    for m in range(M):
        om = model_outs[m]                              # (B, W, F)
        q = x @ wq[m]
        k = om @ wk[m]
        v = om @ wv[m]
        s = jnp.einsum("bwf,buf->bwu", q, k) / (F ** 0.5)
        w = jax.nn.softmax(s, axis=-1)
        a = jnp.einsum("bwu,buf->bwf", w, v)
        mu = jnp.mean(a, axis=(1, 2), keepdims=True)
        var = jnp.mean((a - mu) ** 2, axis=(1, 2), keepdims=True)
        a_n = (a - mu) / jnp.sqrt(var + LN_EPS) * ln_g + ln_b
        attn_means.append(jnp.mean(a_n, axis=1))        # (B, F)
    stacked = jnp.stack(attn_means, axis=0)             # (M, B, F)
    wts = jax.nn.softmax(stacked, axis=0)
    final = sum(wts[m][:, None, :] * model_outs[m] for m in range(M))
    return final


if __name__ == "__main__":
    # Small shapes consistent with the module: 3 frozen sub-models,
    # window_size=16, feature_dim=8, batch=8 (blocked 2 per grid step ->
    # 4 grid steps, so both v7x TensorCores get >=2 steps each).
    B, W, F, M = 8, 16, 8, 3
    Bb = 2
    key = jax.random.PRNGKey(0)
    kx, kq, kk, kv, ka, kb = jax.random.split(key, 6)

    x = jax.random.normal(kx, (B, W, F), dtype=jnp.float32)

    # Xavier-uniform init for the per-model attention projections.
    bound = math.sqrt(6.0 / (F + F))
    wq = jax.random.uniform(kq, (M, F, F), jnp.float32, -bound, bound)
    wk = jax.random.uniform(kk, (M, F, F), jnp.float32, -bound, bound)
    wv = jax.random.uniform(kv, (M, F, F), jnp.float32, -bound, bound)

    # LayerNorm([W, F]) default init: gamma=1, beta=0.
    ln_g = jnp.ones((W, F), jnp.float32)
    ln_b = jnp.zeros((W, F), jnp.float32)

    # Frozen black-box sub-models emulated as deterministic linear maps (glue).
    A = jax.random.normal(ka, (M, F, F), dtype=jnp.float32) * 0.5
    bias = jax.random.normal(kb, (M, F), dtype=jnp.float32) * 0.1
    model_outs = jnp.einsum("bwf,mfg->mbwg", x, A) + bias[:, None, None, :]  # (M,B,W,F)

    # TODO(synk): residual_weight is declared in __init__ but never used in forward; omitted.

    ref = reference_forward(x, model_outs, wq, wk, wv, ln_g, ln_b)

    # f32 MXU path (tolerance accounts for the approx EUP reciprocal in softmax).
    out = hybrid_forward(x, model_outs, wq, wk, wv, ln_g, ln_b, block_b=Bb)
    out = jax.block_until_ready(out)
    assert out.shape == (B, W, F)
    assert jnp.allclose(out, ref, atol=5e-3, rtol=5e-3), "f32 mismatch vs reference"

    # bf16 MXU operands / f32 accumulation path (v6e / v7x native MXU rate).
    out_bf = hybrid_forward(x, model_outs, wq, wk, wv, ln_g, ln_b,
                            block_b=Bb, mxu_dtype=jnp.bfloat16)
    out_bf = jax.block_until_ready(out_bf)
    assert jnp.allclose(out_bf, ref, atol=5e-2, rtol=5e-2), "bf16 mismatch vs reference"

    print("KERNEL_OK")
</pallas_src>

<mosaic_0001>
module attributes {stable_mosaic.version = 11 : i64} {
  func.func @hybrid_kernel(%arg0: i32, %arg1: memref<32x8xf32, #tpu.memory_space<vmem>>, %arg2: memref<3x32x8xf32, #tpu.memory_space<vmem>>, %arg3: memref<80x8xf32, #tpu.memory_space<vmem>>, %arg4: memref<32x8xf32, #tpu.memory_space<vmem>>) attributes {dimension_semantics = [#tpu.dimension_semantics<parallel>], iteration_bounds = array<i64: 4>, scalar_prefetch = 0 : i64, scratch_operands = 0 : i64, tpu.core_type = #tpu.core_type<tc>, window_params = [{transform_indices = @transform_0, window_bounds = array<i64: 32, 8>}, {transform_indices = @transform_1, window_bounds = array<i64: 3, 32, 8>}, {pipeline_mode = #tpu.pipeline_mode<synchronous>, transform_indices = @transform_2, window_bounds = array<i64: 80, 8>}, {transform_indices = @transform_3, window_bounds = array<i64: 32, 8>}]} {
    %c48 = arith.constant 48 : index
    %c0 = arith.constant 0 : index
    %0 = vector.load %arg3[%c48, %c0] : memref<80x8xf32, #tpu.memory_space<vmem>>, vector<16x8xf32>
    %c64 = arith.constant 64 : index
    %c0_0 = arith.constant 0 : index
    %1 = vector.load %arg3[%c64, %c0_0] : memref<80x8xf32, #tpu.memory_space<vmem>>, vector<16x8xf32>
    %cst = arith.constant dense<0.000000e+00> : vector<8xf32>
    %2 = vector.multi_reduction <add>, %0, %cst [0] : vector<16x8xf32> to vector<8xf32>
    %3 = vector.shape_cast %2 : vector<8xf32> to vector<1x8xf32>
    %cst_1 = arith.constant 1.600000e+01 : f32
    %4 = vector.broadcast %cst_1 : f32 to vector<1x8xf32>
    %5 = arith.divf %3, %4 : vector<1x8xf32>
    %cst_2 = arith.constant dense<0.000000e+00> : vector<8xf32>
    %6 = vector.multi_reduction <add>, %1, %cst_2 [0] : vector<16x8xf32> to vector<8xf32>
    %7 = vector.shape_cast %6 : vector<8xf32> to vector<1x8xf32>
    %cst_3 = arith.constant 1.600000e+01 : f32
    %8 = vector.broadcast %cst_3 : f32 to vector<1x8xf32>
    %9 = arith.divf %7, %8 : vector<1x8xf32>
    %c0_4 = arith.constant 0 : index
    %c0_5 = arith.constant 0 : index
    %10 = vector.load %arg1[%c0_4, %c0_5] : memref<32x8xf32, #tpu.memory_space<vmem>>, vector<32x8xf32>
    %c0_6 = arith.constant 0 : index
    %c0_7 = arith.constant 0 : index
    %11 = vector.load %arg3[%c0_6, %c0_7] : memref<80x8xf32, #tpu.memory_space<vmem>>, vector<8x8xf32>
    %c24 = arith.constant 24 : index
    %c0_8 = arith.constant 0 : index
    %12 = vector.load %arg3[%c24, %c0_8] : memref<80x8xf32, #tpu.memory_space<vmem>>, vector<8x8xf32>
    %c0_9 = arith.constant 0 : index
    %c0_10 = arith.constant 0 : index
    %c0_11 = arith.constant 0 : index
    %13 = vector.load %arg2[%c0_9, %c0_10, %c0_11] : memref<3x32x8xf32, #tpu.memory_space<vmem>>, vector<1x32x8xf32>
    %14 = vector.shape_cast %13 : vector<1x32x8xf32> to vector<32x8xf32>
    %cst_12 = arith.constant dense<0.000000e+00> : vector<32x8xf32>
    %15 = tpu.matmul %10, %11, %cst_12 {dimension_numbers = #tpu.dot_dimension_numbers<[1], [0], [0], [1], [0, 0, 1, 1], [], []>} : vector<32x8xf32>, vector<8x8xf32>, vector<32x8xf32> -> vector<32x8xf32>
    %cst_13 = arith.constant dense<0.000000e+00> : vector<32x8xf32>
    %16 = tpu.matmul %14, %12, %cst_13 {dimension_numbers = #tpu.dot_dimension_numbers<[1], [0], [0], [1], [0, 0, 1, 1], [], []>} : vector<32x8xf32>, vector<8x8xf32>, vector<32x8xf32> -> vector<32x8xf32>
    %17 = vector.extract_strided_slice %15 {offsets = [0, 0], sizes = [16, 8], strides = [1, 1]} : vector<32x8xf32> to vector<16x8xf32>
    %18 = vector.extract_strided_slice %14 {offsets = [0, 0], sizes = [16, 8], strides = [1, 1]} : vector<32x8xf32> to vector<16x8xf32>
    %cst_14 = arith.constant dense<0.000000e+00> : vector<16x16xf32>
    %19 = tpu.matmul %17, %18, %cst_14 {dimension_numbers = #tpu.dot_dimension_numbers<[1], [1], [0], [0], [0, 0, 1, 0], [], []>} : vector<16x8xf32>, vector<16x8xf32>, vector<16x16xf32> -> vector<16x16xf32>
    %cst_15 = arith.constant dense<0xFF800000> : vector<16xf32>
    %20 = vector.multi_reduction <maximumf>, %19, %cst_15 [1] : vector<16x16xf32> to vector<16xf32>
    %21 = vector.shape_cast %20 : vector<16xf32> to vector<16x1xf32>
    %22 = vector.broadcast %21 : vector<16x1xf32> to vector<16x16xf32>
    %23 = arith.subf %19, %22 : vector<16x16xf32>
    %24 = math.exp %23 : vector<16x16xf32>
    %cst_16 = arith.constant dense<0.000000e+00> : vector<16xf32>
    %25 = vector.multi_reduction <add>, %24, %cst_16 [1] : vector<16x16xf32> to vector<16xf32>
    %26 = vector.shape_cast %25 : vector<16xf32> to vector<16x1xf32>
    %27 = tpu.reciprocal %26 {approx = true} : vector<16x1xf32> -> vector<16x1xf32>
    %28 = vector.broadcast %27 : vector<16x1xf32> to vector<16x16xf32>
    %29 = arith.mulf %24, %28 : vector<16x16xf32>
    %30 = vector.extract_strided_slice %16 {offsets = [0, 0], sizes = [16, 8], strides = [1, 1]} : vector<32x8xf32> to vector<16x8xf32>
    %cst_17 = arith.constant dense<0.000000e+00> : vector<16x8xf32>
    %31 = tpu.matmul %29, %30, %cst_17 {dimension_numbers = #tpu.dot_dimension_numbers<[1], [0], [0], [1], [0, 0, 1, 1], [], []>} : vector<16x16xf32>, vector<16x8xf32>, vector<16x8xf32> -> vector<16x8xf32>
    %32 = vector.shape_cast %31 : vector<16x8xf32> to vector<1x16x8xf32>
    %cst_18 = arith.constant dense<0.000000e+00> : vector<1xf32>
    %33 = vector.multi_reduction <add>, %32, %cst_18 [1, 2] : vector<1x16x8xf32> to vector<1xf32>
    %34 = vector.shape_cast %33 : vector<1xf32> to vector<1x1x1xf32>
    %35 = vector.extract %34[0, 0, 0] : f32 from vector<1x1x1xf32>
    %cst_19 = arith.constant 1.280000e+02 : f32
    %36 = arith.divf %35, %cst_19 : f32
    %37 = arith.mulf %31, %31 : vector<16x8xf32>
    %38 = vector.shape_cast %37 : vector<16x8xf32> to vector<1x16x8xf32>
    %cst_20 = arith.constant dense<0.000000e+00> : vector<1xf32>
    %39 = vector.multi_reduction <add>, %38, %cst_20 [1, 2] : vector<1x16x8xf32> to vector<1xf32>
    %40 = vector.shape_cast %39 : vector<1xf32> to vector<1x1x1xf32>
    %41 = vector.extract %40[0, 0, 0] : f32 from vector<1x1x1xf32>
    %cst_21 = arith.constant 1.280000e+02 : f32
    %42 = arith.divf %41, %cst_21 : f32
    %43 = arith.mulf %36, %36 : f32
    %44 = arith.subf %42, %43 : f32
    %cst_22 = arith.constant 9.99999974E-6 : f32
    %45 = arith.addf %44, %cst_22 : f32
    %46 = math.rsqrt %45 : f32
    %47 = arith.mulf %31, %0 : vector<16x8xf32>
    %cst_23 = arith.constant dense<0.000000e+00> : vector<8xf32>
    %48 = vector.multi_reduction <add>, %47, %cst_23 [0] : vector<16x8xf32> to vector<8xf32>
    %49 = vector.shape_cast %48 : vector<8xf32> to vector<1x8xf32>
    %cst_24 = arith.constant 1.600000e+01 : f32
    %50 = vector.broadcast %cst_24 : f32 to vector<1x8xf32>
    %51 = arith.divf %49, %50 : vector<1x8xf32>
    %52 = vector.broadcast %36 : f32 to vector<1x8xf32>
    %53 = arith.mulf %52, %5 : vector<1x8xf32>
    %54 = arith.subf %51, %53 : vector<1x8xf32>
    %55 = vector.broadcast %46 : f32 to vector<1x8xf32>
    %56 = arith.mulf %55, %54 : vector<1x8xf32>
    %57 = arith.addf %56, %9 : vector<1x8xf32>
    %58 = vector.extract_strided_slice %15 {offsets = [16, 0], sizes = [16, 8], strides = [1, 1]} : vector<32x8xf32> to vector<16x8xf32>
    %59 = vector.extract_strided_slice %14 {offsets = [16, 0], sizes = [16, 8], strides = [1, 1]} : vector<32x8xf32> to vector<16x8xf32>
    %cst_25 = arith.constant dense<0.000000e+00> : vector<16x16xf32>
    %60 = tpu.matmul %58, %59, %cst_25 {dimension_numbers = #tpu.dot_dimension_numbers<[1], [1], [0], [0], [0, 0, 1, 0], [], []>} : vector<16x8xf32>, vector<16x8xf32>, vector<16x16xf32> -> vector<16x16xf32>
    %cst_26 = arith.constant dense<0xFF800000> : vector<16xf32>
    %61 = vector.multi_reduction <maximumf>, %60, %cst_26 [1] : vector<16x16xf32> to vector<16xf32>
    %62 = vector.shape_cast %61 : vector<16xf32> to vector<16x1xf32>
    %63 = vector.broadcast %62 : vector<16x1xf32> to vector<16x16xf32>
    %64 = arith.subf %60, %63 : vector<16x16xf32>
    %65 = math.exp %64 : vector<16x16xf32>
    %cst_27 = arith.constant dense<0.000000e+00> : vector<16xf32>
    %66 = vector.multi_reduction <add>, %65, %cst_27 [1] : vector<16x16xf32> to vector<16xf32>
    %67 = vector.shape_cast %66 : vector<16xf32> to vector<16x1xf32>
    %68 = tpu.reciprocal %67 {approx = true} : vector<16x1xf32> -> vector<16x1xf32>
    %69 = vector.broadcast %68 : vector<16x1xf32> to vector<16x16xf32>
    %70 = arith.mulf %65, %69 : vector<16x16xf32>
    %71 = vector.extract_strided_slice %16 {offsets = [16, 0], sizes = [16, 8], strides = [1, 1]} : vector<32x8xf32> to vector<16x8xf32>
    %cst_28 = arith.constant dense<0.000000e+00> : vector<16x8xf32>
    %72 = tpu.matmul %70, %71, %cst_28 {dimension_numbers = #tpu.dot_dimension_numbers<[1], [0], [0], [1], [0, 0, 1, 1], [], []>} : vector<16x16xf32>, vector<16x8xf32>, vector<16x8xf32> -> vector<16x8xf32>
    %73 = vector.shape_cast %72 : vector<16x8xf32> to vector<1x16x8xf32>
    %cst_29 = arith.constant dense<0.000000e+00> : vector<1xf32>
    %74 = vector.multi_reduction <add>, %73, %cst_29 [1, 2] : vector<1x16x8xf32> to vector<1xf32>
    %75 = vector.shape_cast %74 : vector<1xf32> to vector<1x1x1xf32>
    %76 = vector.extract %75[0, 0, 0] : f32 from vector<1x1x1xf32>
    %cst_30 = arith.constant 1.280000e+02 : f32
    %77 = arith.divf %76, %cst_30 : f32
    %78 = arith.mulf %72, %72 : vector<16x8xf32>
    %79 = vector.shape_cast %78 : vector<16x8xf32> to vector<1x16x8xf32>
    %cst_31 = arith.constant dense<0.000000e+00> : vector<1xf32>
    %80 = vector.multi_reduction <add>, %79, %cst_31 [1, 2] : vector<1x16x8xf32> to vector<1xf32>
    %81 = vector.shape_cast %80 : vector<1xf32> to vector<1x1x1xf32>
    %82 = vector.extract %81[0, 0, 0] : f32 from vector<1x1x1xf32>
    %cst_32 = arith.constant 1.280000e+02 : f32
    %83 = arith.divf %82, %cst_32 : f32
    %84 = arith.mulf %77, %77 : f32
    %85 = arith.subf %83, %84 : f32
    %cst_33 = arith.constant 9.99999974E-6 : f32
    %86 = arith.addf %85, %cst_33 : f32
    %87 = math.rsqrt %86 : f32
    %88 = arith.mulf %72, %0 : vector<16x8xf32>
    %cst_34 = arith.constant dense<0.000000e+00> : vector<8xf32>
    %89 = vector.multi_reduction <add>, %88, %cst_34 [0] : vector<16x8xf32> to vector<8xf32>
    %90 = vector.shape_cast %89 : vector<8xf32> to vector<1x8xf32>
    %cst_35 = arith.constant 1.600000e+01 : f32
    %91 = vector.broadcast %cst_35 : f32 to vector<1x8xf32>
    %92 = arith.divf %90, %91 : vector<1x8xf32>
    %93 = vector.broadcast %77 : f32 to vector<1x8xf32>
    %94 = arith.mulf %93, %5 : vector<1x8xf32>
    %95 = arith.subf %92, %94 : vector<1x8xf32>
    %96 = vector.broadcast %87 : f32 to vector<1x8xf32>
    %97 = arith.mulf %96, %95 : vector<1x8xf32>
    %98 = arith.addf %97, %9 : vector<1x8xf32>
    %c8 = arith.constant 8 : index
    %c0_36 = arith.constant 0 : index
    %99 = vector.load %arg3[%c8, %c0_36] : memref<80x8xf32, #tpu.memory_space<vmem>>, vector<8x8xf32>
    %c32 = arith.constant 32 : index
    %c0_37 = arith.constant 0 : index
    %100 = vector.load %arg3[%c32, %c0_37] : memref<80x8xf32, #tpu.memory_space<vmem>>, vector<8x8xf32>
    %c1 = arith.constant 1 : index
    %c0_38 = arith.constant 0 : index
    %c0_39 = arith.constant 0 : index
    %101 = vector.load %arg2[%c1, %c0_38, %c0_39] : memref<3x32x8xf32, #tpu.memory_space<vmem>>, vector<1x32x8xf32>
    %102 = vector.shape_cast %101 : vector<1x32x8xf32> to vector<32x8xf32>
    %cst_40 = arith.constant dense<0.000000e+00> : vector<32x8xf32>
    %103 = tpu.matmul %10, %99, %cst_40 {dimension_numbers = #tpu.dot_dimension_numbers<[1], [0], [0], [1], [0, 0, 1, 1], [], []>} : vector<32x8xf32>, vector<8x8xf32>, vector<32x8xf32> -> vector<32x8xf32>
    %cst_41 = arith.constant dense<0.000000e+00> : vector<32x8xf32>
    %104 = tpu.matmul %102, %100, %cst_41 {dimension_numbers = #tpu.dot_dimension_numbers<[1], [0], [0], [1], [0, 0, 1, 1], [], []>} : vector<32x8xf32>, vector<8x8xf32>, vector<32x8xf32> -> vector<32x8xf32>
    %105 = vector.extract_strided_slice %103 {offsets = [0, 0], sizes = [16, 8], strides = [1, 1]} : vector<32x8xf32> to vector<16x8xf32>
    %106 = vector.extract_strided_slice %102 {offsets = [0, 0], sizes = [16, 8], strides = [1, 1]} : vector<32x8xf32> to vector<16x8xf32>
    %cst_42 = arith.constant dense<0.000000e+00> : vector<16x16xf32>
    %107 = tpu.matmul %105, %106, %cst_42 {dimension_numbers = #tpu.dot_dimension_numbers<[1], [1], [0], [0], [0, 0, 1, 0], [], []>} : vector<16x8xf32>, vector<16x8xf32>, vector<16x16xf32> -> vector<16x16xf32>
    %cst_43 = arith.constant dense<0xFF800000> : vector<16xf32>
    %108 = vector.multi_reduction <maximumf>, %107, %cst_43 [1] : vector<16x16xf32> to vector<16xf32>
    %109 = vector.shape_cast %108 : vector<16xf32> to vector<16x1xf32>
    %110 = vector.broadcast %109 : vector<16x1xf32> to vector<16x16xf32>
    %111 = arith.subf %107, %110 : vector<16x16xf32>
    %112 = math.exp %111 : vector<16x16xf32>
    %cst_44 = arith.constant dense<0.000000e+00> : vector<16xf32>
    %113 = vector.multi_reduction <add>, %112, %cst_44 [1] : vector<16x16xf32> to vector<16xf32>
    %114 = vector.shape_cast %113 : vector<16xf32> to vector<16x1xf32>
    %115 = tpu.reciprocal %114 {approx = true} : vector<16x1xf32> -> vector<16x1xf32>
    %116 = vector.broadcast %115 : vector<16x1xf32> to vector<16x16xf32>
    %117 = arith.mulf %112, %116 : vector<16x16xf32>
    %118 = vector.extract_strided_slice %104 {offsets = [0, 0], sizes = [16, 8], strides = [1, 1]} : vector<32x8xf32> to vector<16x8xf32>
    %cst_45 = arith.constant dense<0.000000e+00> : vector<16x8xf32>
    %119 = tpu.matmul %117, %118, %cst_45 {dimension_numbers = #tpu.dot_dimension_numbers<[1], [0], [0], [1], [0, 0, 1, 1], [], []>} : vector<16x16xf32>, vector<16x8xf32>, vector<16x8xf32> -> vector<16x8xf32>
    %120 = vector.shape_cast %119 : vector<16x8xf32> to vector<1x16x8xf32>
    %cst_46 = arith.constant dense<0.000000e+00> : vector<1xf32>
    %121 = vector.multi_reduction <add>, %120, %cst_46 [1, 2] : vector<1x16x8xf32> to vector<1xf32>
    %122 = vector.shape_cast %121 : vector<1xf32> to vector<1x1x1xf32>
    %123 = vector.extract %122[0, 0, 0] : f32 from vector<1x1x1xf32>
    %cst_47 = arith.constant 1.280000e+02 : f32
    %124 = arith.divf %123, %cst_47 : f32
    %125 = arith.mulf %119, %119 : vector<16x8xf32>
    %126 = vector.shape_cast %125 : vector<16x8xf32> to vector<1x16x8xf32>
    %cst_48 = arith.constant dense<0.000000e+00> : vector<1xf32>
    %127 = vector.multi_reduction <add>, %126, %cst_48 [1, 2] : vector<1x16x8xf32> to vector<1xf32>
    %128 = vector.shape_cast %127 : vector<1xf32> to vector<1x1x1xf32>
    %129 = vector.extract %128[0, 0, 0] : f32 from vector<1x1x1xf32>
    %cst_49 = arith.constant 1.280000e+02 : f32
    %130 = arith.divf %129, %cst_49 : f32
    %131 = arith.mulf %124, %124 : f32
    %132 = arith.subf %130, %131 : f32
    %cst_50 = arith.constant 9.99999974E-6 : f32
    %133 = arith.addf %132, %cst_50 : f32
    %134 = math.rsqrt %133 : f32
    %135 = arith.mulf %119, %0 : vector<16x8xf32>
    %cst_51 = arith.constant dense<0.000000e+00> : vector<8xf32>
    %136 = vector.multi_reduction <add>, %135, %cst_51 [0] : vector<16x8xf32> to vector<8xf32>
    %137 = vector.shape_cast %136 : vector<8xf32> to vector<1x8xf32>
    %cst_52 = arith.constant 1.600000e+01 : f32
    %138 = vector.broadcast %cst_52 : f32 to vector<1x8xf32>
    %139 = arith.divf %137, %138 : vector<1x8xf32>
    %140 = vector.broadcast %124 : f32 to vector<1x8xf32>
    %141 = arith.mulf %140, %5 : vector<1x8xf32>
    %142 = arith.subf %139, %141 : vector<1x8xf32>
    %143 = vector.broadcast %134 : f32 to vector<1x8xf32>
    %144 = arith.mulf %143, %142 : vector<1x8xf32>
    %145 = arith.addf %144, %9 : vector<1x8xf32>
    %146 = vector.extract_strided_slice %103 {offsets = [16, 0], sizes = [16, 8], strides = [1, 1]} : vector<32x8xf32> to vector<16x8xf32>
    %147 = vector.extract_strided_slice %102 {offsets = [16, 0], sizes = [16, 8], strides = [1, 1]} : vector<32x8xf32> to vector<16x8xf32>
    %cst_53 = arith.constant dense<0.000000e+00> : vector<16x16xf32>
    %148 = tpu.matmul %146, %147, %cst_53 {dimension_numbers = #tpu.dot_dimension_numbers<[1], [1], [0], [0], [0, 0, 1, 0], [], []>} : vector<16x8xf32>, vector<16x8xf32>, vector<16x16xf32> -> vector<16x16xf32>
    %cst_54 = arith.constant dense<0xFF800000> : vector<16xf32>
    %149 = vector.multi_reduction <maximumf>, %148, %cst_54 [1] : vector<16x16xf32> to vector<16xf32>
    %150 = vector.shape_cast %149 : vector<16xf32> to vector<16x1xf32>
    %151 = vector.broadcast %150 : vector<16x1xf32> to vector<16x16xf32>
    %152 = arith.subf %148, %151 : vector<16x16xf32>
    %153 = math.exp %152 : vector<16x16xf32>
    %cst_55 = arith.constant dense<0.000000e+00> : vector<16xf32>
    %154 = vector.multi_reduction <add>, %153, %cst_55 [1] : vector<16x16xf32> to vector<16xf32>
    %155 = vector.shape_cast %154 : vector<16xf32> to vector<16x1xf32>
    %156 = tpu.reciprocal %155 {approx = true} : vector<16x1xf32> -> vector<16x1xf32>
    %157 = vector.broadcast %156 : vector<16x1xf32> to vector<16x16xf32>
    %158 = arith.mulf %153, %157 : vector<16x16xf32>
    %159 = vector.extract_strided_slice %104 {offsets = [16, 0], sizes = [16, 8], strides = [1, 1]} : vector<32x8xf32> to vector<16x8xf32>
    %cst_56 = arith.constant dense<0.000000e+00> : vector<16x8xf32>
    %160 = tpu.matmul %158, %159, %cst_56 {dimension_numbers = #tpu.dot_dimension_numbers<[1], [0], [0], [1], [0, 0, 1, 1], [], []>} : vector<16x16xf32>, vector<16x8xf32>, vector<16x8xf32> -> vector<16x8xf32>
    %161 = vector.shape_cast %160 : vector<16x8xf32> to vector<1x16x8xf32>
    %cst_57 = arith.constant dense<0.000000e+00> : vector<1xf32>
    %162 = vector.multi_reduction <add>, %161, %cst_57 [1, 2] : vector<1x16x8xf32> to vector<1xf32>
    %163 = vector.shape_cast %162 : vector<1xf32> to vector<1x1x1xf32>
    %164 = vector.extract %163[0, 0, 0] : f32 from vector<1x1x1xf32>
    %cst_58 = arith.constant 1.280000e+02 : f32
    %165 = arith.divf %164, %cst_58 : f32
    %166 = arith.mulf %160, %160 : vector<16x8xf32>
    %167 = vector.shape_cast %166 : vector<16x8xf32> to vector<1x16x8xf32>
    %cst_59 = arith.constant dense<0.000000e+00> : vector<1xf32>
    %168 = vector.multi_reduction <add>, %167, %cst_59 [1, 2] : vector<1x16x8xf32> to vector<1xf32>
    %169 = vector.shape_cast %168 : vector<1xf32> to vector<1x1x1xf32>
    %170 = vector.extract %169[0, 0, 0] : f32 from vector<1x1x1xf32>
    %cst_60 = arith.constant 1.280000e+02 : f32
    %171 = arith.divf %170, %cst_60 : f32
    %172 = arith.mulf %165, %165 : f32
    %173 = arith.subf %171, %172 : f32
    %cst_61 = arith.constant 9.99999974E-6 : f32
    %174 = arith.addf %173, %cst_61 : f32
    %175 = math.rsqrt %174 : f32
    %176 = arith.mulf %160, %0 : vector<16x8xf32>
    %cst_62 = arith.constant dense<0.000000e+00> : vector<8xf32>
    %177 = vector.multi_reduction <add>, %176, %cst_62 [0] : vector<16x8xf32> to vector<8xf32>
    %178 = vector.shape_cast %177 : vector<8xf32> to vector<1x8xf32>
    %cst_63 = arith.constant 1.600000e+01 : f32
    %179 = vector.broadcast %cst_63 : f32 to vector<1x8xf32>
    %180 = arith.divf %178, %179 : vector<1x8xf32>
    %181 = vector.broadcast %165 : f32 to vector<1x8xf32>
    %182 = arith.mulf %181, %5 : vector<1x8xf32>
    %183 = arith.subf %180, %182 : vector<1x8xf32>
    %184 = vector.broadcast %175 : f32 to vector<1x8xf32>
    %185 = arith.mulf %184, %183 : vector<1x8xf32>
    %186 = arith.addf %185, %9 : vector<1x8xf32>
    %c16 = arith.constant 16 : index
    %c0_64 = arith.constant 0 : index
    %187 = vector.load %arg3[%c16, %c0_64] : memref<80x8xf32, #tpu.memory_space<vmem>>, vector<8x8xf32>
    %c40 = arith.constant 40 : index
    %c0_65 = arith.constant 0 : index
    %188 = vector.load %arg3[%c40, %c0_65] : memref<80x8xf32, #tpu.memory_space<vmem>>, vector<8x8xf32>
    %c2 = arith.constant 2 : index
    %c0_66 = arith.constant 0 : index
    %c0_67 = arith.constant 0 : index
    %189 = vector.load %arg2[%c2, %c0_66, %c0_67] : memref<3x32x8xf32, #tpu.memory_space<vmem>>, vector<1x32x8xf32>
    %190 = vector.shape_cast %189 : vector<1x32x8xf32> to vector<32x8xf32>
    %cst_68 = arith.constant dense<0.000000e+00> : vector<32x8xf32>
    %191 = tpu.matmul %10, %187, %cst_68 {dimension_numbers = #tpu.dot_dimension_numbers<[1], [0], [0], [1], [0, 0, 1, 1], [], []>} : vector<32x8xf32>, vector<8x8xf32>, vector<32x8xf32> -> vector<32x8xf32>
    %cst_69 = arith.constant dense<0.000000e+00> : vector<32x8xf32>
    %192 = tpu.matmul %190, %188, %cst_69 {dimension_numbers = #tpu.dot_dimension_numbers<[1], [0], [0], [1], [0, 0, 1, 1], [], []>} : vector<32x8xf32>, vector<8x8xf32>, vector<32x8xf32> -> vector<32x8xf32>
    %193 = vector.extract_strided_slice %191 {offsets = [0, 0], sizes = [16, 8], strides = [1, 1]} : vector<32x8xf32> to vector<16x8xf32>
    %194 = vector.extract_strided_slice %190 {offsets = [0, 0], sizes = [16, 8], strides = [1, 1]} : vector<32x8xf32> to vector<16x8xf32>
    %cst_70 = arith.constant dense<0.000000e+00> : vector<16x16xf32>
    %195 = tpu.matmul %193, %194, %cst_70 {dimension_numbers = #tpu.dot_dimension_numbers<[1], [1], [0], [0], [0, 0, 1, 0], [], []>} : vector<16x8xf32>, vector<16x8xf32>, vector<16x16xf32> -> vector<16x16xf32>
    %cst_71 = arith.constant dense<0xFF800000> : vector<16xf32>
    %196 = vector.multi_reduction <maximumf>, %195, %cst_71 [1] : vector<16x16xf32> to vector<16xf32>
    %197 = vector.shape_cast %196 : vector<16xf32> to vector<16x1xf32>
    %198 = vector.broadcast %197 : vector<16x1xf32> to vector<16x16xf32>
    %199 = arith.subf %195, %198 : vector<16x16xf32>
    %200 = math.exp %199 : vector<16x16xf32>
    %cst_72 = arith.constant dense<0.000000e+00> : vector<16xf32>
    %201 = vector.multi_reduction <add>, %200, %cst_72 [1] : vector<16x16xf32> to vector<16xf32>
    %202 = vector.shape_cast %201 : vector<16xf32> to vector<16x1xf32>
    %203 = tpu.reciprocal %202 {approx = true} : vector<16x1xf32> -> vector<16x1xf32>
    %204 = vector.broadcast %203 : vector<16x1xf32> to vector<16x16xf32>
    %205 = arith.mulf %200, %204 : vector<16x16xf32>
    %206 = vector.extract_strided_slice %192 {offsets = [0, 0], sizes = [16, 8], strides = [1, 1]} : vector<32x8xf32> to vector<16x8xf32>
    %cst_73 = arith.constant dense<0.000000e+00> : vector<16x8xf32>
    %207 = tpu.matmul %205, %206, %cst_73 {dimension_numbers = #tpu.dot_dimension_numbers<[1], [0], [0], [1], [0, 0, 1, 1], [], []>} : vector<16x16xf32>, vector<16x8xf32>, vector<16x8xf32> -> vector<16x8xf32>
    %208 = vector.shape_cast %207 : vector<16x8xf32> to vector<1x16x8xf32>
    %cst_74 = arith.constant dense<0.000000e+00> : vector<1xf32>
    %209 = vector.multi_reduction <add>, %208, %cst_74 [1, 2] : vector<1x16x8xf32> to vector<1xf32>
    %210 = vector.shape_cast %209 : vector<1xf32> to vector<1x1x1xf32>
    %211 = vector.extract %210[0, 0, 0] : f32 from vector<1x1x1xf32>
    %cst_75 = arith.constant 1.280000e+02 : f32
    %212 = arith.divf %211, %cst_75 : f32
    %213 = arith.mulf %207, %207 : vector<16x8xf32>
    %214 = vector.shape_cast %213 : vector<16x8xf32> to vector<1x16x8xf32>
    %cst_76 = arith.constant dense<0.000000e+00> : vector<1xf32>
    %215 = vector.multi_reduction <add>, %214, %cst_76 [1, 2] : vector<1x16x8xf32> to vector<1xf32>
    %216 = vector.shape_cast %215 : vector<1xf32> to vector<1x1x1xf32>
    %217 = vector.extract %216[0, 0, 0] : f32 from vector<1x1x1xf32>
    %cst_77 = arith.constant 1.280000e+02 : f32
    %218 = arith.divf %217, %cst_77 : f32
    %219 = arith.mulf %212, %212 : f32
    %220 = arith.subf %218, %219 : f32
    %cst_78 = arith.constant 9.99999974E-6 : f32
    %221 = arith.addf %220, %cst_78 : f32
    %222 = math.rsqrt %221 : f32
    %223 = arith.mulf %207, %0 : vector<16x8xf32>
    %cst_79 = arith.constant dense<0.000000e+00> : vector<8xf32>
    %224 = vector.multi_reduction <add>, %223, %cst_79 [0] : vector<16x8xf32> to vector<8xf32>
    %225 = vector.shape_cast %224 : vector<8xf32> to vector<1x8xf32>
    %cst_80 = arith.constant 1.600000e+01 : f32
    %226 = vector.broadcast %cst_80 : f32 to vector<1x8xf32>
    %227 = arith.divf %225, %226 : vector<1x8xf32>
    %228 = vector.broadcast %212 : f32 to vector<1x8xf32>
    %229 = arith.mulf %228, %5 : vector<1x8xf32>
    %230 = arith.subf %227, %229 : vector<1x8xf32>
    %231 = vector.broadcast %222 : f32 to vector<1x8xf32>
    %232 = arith.mulf %231, %230 : vector<1x8xf32>
    %233 = arith.addf %232, %9 : vector<1x8xf32>
    %234 = vector.extract_strided_slice %191 {offsets = [16, 0], sizes = [16, 8], strides = [1, 1]} : vector<32x8xf32> to vector<16x8xf32>
    %235 = vector.extract_strided_slice %190 {offsets = [16, 0], sizes = [16, 8], strides = [1, 1]} : vector<32x8xf32> to vector<16x8xf32>
    %cst_81 = arith.constant dense<0.000000e+00> : vector<16x16xf32>
    %236 = tpu.matmul %234, %235, %cst_81 {dimension_numbers = #tpu.dot_dimension_numbers<[1], [1], [0], [0], [0, 0, 1, 0], [], []>} : vector<16x8xf32>, vector<16x8xf32>, vector<16x16xf32> -> vector<16x16xf32>
    %cst_82 = arith.constant dense<0xFF800000> : vector<16xf32>
    %237 = vector.multi_reduction <maximumf>, %236, %cst_82 [1] : vector<16x16xf32> to vector<16xf32>
    %238 = vector.shape_cast %237 : vector<16xf32> to vector<16x1xf32>
    %239 = vector.broadcast %238 : vector<16x1xf32> to vector<16x16xf32>
    %240 = arith.subf %236, %239 : vector<16x16xf32>
    %241 = math.exp %240 : vector<16x16xf32>
    %cst_83 = arith.constant dense<0.000000e+00> : vector<16xf32>
    %242 = vector.multi_reduction <add>, %241, %cst_83 [1] : vector<16x16xf32> to vector<16xf32>
    %243 = vector.shape_cast %242 : vector<16xf32> to vector<16x1xf32>
    %244 = tpu.reciprocal %243 {approx = true} : vector<16x1xf32> -> vector<16x1xf32>
    %245 = vector.broadcast %244 : vector<16x1xf32> to vector<16x16xf32>
    %246 = arith.mulf %241, %245 : vector<16x16xf32>
    %247 = vector.extract_strided_slice %192 {offsets = [16, 0], sizes = [16, 8], strides = [1, 1]} : vector<32x8xf32> to vector<16x8xf32>
    %cst_84 = arith.constant dense<0.000000e+00> : vector<16x8xf32>
    %248 = tpu.matmul %246, %247, %cst_84 {dimension_numbers = #tpu.dot_dimension_numbers<[1], [0], [0], [1], [0, 0, 1, 1], [], []>} : vector<16x16xf32>, vector<16x8xf32>, vector<16x8xf32> -> vector<16x8xf32>
    %249 = vector.shape_cast %248 : vector<16x8xf32> to vector<1x16x8xf32>
    %cst_85 = arith.constant dense<0.000000e+00> : vector<1xf32>
    %250 = vector.multi_reduction <add>, %249, %cst_85 [1, 2] : vector<1x16x8xf32> to vector<1xf32>
    %251 = vector.shape_cast %250 : vector<1xf32> to vector<1x1x1xf32>
    %252 = vector.extract %251[0, 0, 0] : f32 from vector<1x1x1xf32>
    %cst_86 = arith.constant 1.280000e+02 : f32
    %253 = arith.divf %252, %cst_86 : f32
    %254 = arith.mulf %248, %248 : vector<16x8xf32>
    %255 = vector.shape_cast %254 : vector<16x8xf32> to vector<1x16x8xf32>
    %cst_87 = arith.constant dense<0.000000e+00> : vector<1xf32>
    %256 = vector.multi_reduction <add>, %255, %cst_87 [1, 2] : vector<1x16x8xf32> to vector<1xf32>
    %257 = vector.shape_cast %256 : vector<1xf32> to vector<1x1x1xf32>
    %258 = vector.extract %257[0, 0, 0] : f32 from vector<1x1x1xf32>
    %cst_88 = arith.constant 1.280000e+02 : f32
    %259 = arith.divf %258, %cst_88 : f32
    %260 = arith.mulf %253, %253 : f32
    %261 = arith.subf %259, %260 : f32
    %cst_89 = arith.constant 9.99999974E-6 : f32
    %262 = arith.addf %261, %cst_89 : f32
    %263 = math.rsqrt %262 : f32
    %264 = arith.mulf %248, %0 : vector<16x8xf32>
    %cst_90 = arith.constant dense<0.000000e+00> : vector<8xf32>
    %265 = vector.multi_reduction <add>, %264, %cst_90 [0] : vector<16x8xf32> to vector<8xf32>
    %266 = vector.shape_cast %265 : vector<8xf32> to vector<1x8xf32>
    %cst_91 = arith.constant 1.600000e+01 : f32
    %267 = vector.broadcast %cst_91 : f32 to vector<1x8xf32>
    %268 = arith.divf %266, %267 : vector<1x8xf32>
    %269 = vector.broadcast %253 : f32 to vector<1x8xf32>
    %270 = arith.mulf %269, %5 : vector<1x8xf32>
    %271 = arith.subf %268, %270 : vector<1x8xf32>
    %272 = vector.broadcast %263 : f32 to vector<1x8xf32>
    %273 = arith.mulf %272, %271 : vector<1x8xf32>
    %274 = arith.addf %273, %9 : vector<1x8xf32>
    %275 = arith.maximumf %57, %145 : vector<1x8xf32>
    %276 = arith.maximumf %275, %233 : vector<1x8xf32>
    %277 = arith.subf %57, %276 : vector<1x8xf32>
    %278 = math.exp %277 : vector<1x8xf32>
    %279 = arith.subf %145, %276 : vector<1x8xf32>
    %280 = math.exp %279 : vector<1x8xf32>
    %281 = arith.subf %233, %276 : vector<1x8xf32>
    %282 = math.exp %281 : vector<1x8xf32>
    %283 = arith.addf %278, %280 : vector<1x8xf32>
    %284 = arith.addf %283, %282 : vector<1x8xf32>
    %285 = tpu.reciprocal %284 {approx = true} : vector<1x8xf32> -> vector<1x8xf32>
    %286 = arith.mulf %278, %285 : vector<1x8xf32>
    %c0_92 = arith.constant 0 : index
    %c0_93 = arith.constant 0 : index
    %c0_94 = arith.constant 0 : index
    %287 = vector.load %arg2[%c0_92, %c0_93, %c0_94] : memref<3x32x8xf32, #tpu.memory_space<vmem>>, vector<1x16x8xf32>
    %288 = vector.shape_cast %287 : vector<1x16x8xf32> to vector<16x8xf32>
    %289 = vector.broadcast %286 : vector<1x8xf32> to vector<16x8xf32>
    %290 = arith.mulf %289, %288 : vector<16x8xf32>
    %291 = arith.mulf %280, %285 : vector<1x8xf32>
    %c1_95 = arith.constant 1 : index
    %c0_96 = arith.constant 0 : index
    %c0_97 = arith.constant 0 : index
    %292 = vector.load %arg2[%c1_95, %c0_96, %c0_97] : memref<3x32x8xf32, #tpu.memory_space<vmem>>, vector<1x16x8xf32>
    %293 = vector.shape_cast %292 : vector<1x16x8xf32> to vector<16x8xf32>
    %294 = vector.broadcast %291 : vector<1x8xf32> to vector<16x8xf32>
    %295 = arith.mulf %294, %293 : vector<16x8xf32>
    %296 = arith.addf %290, %295 : vector<16x8xf32>
    %297 = arith.mulf %282, %285 : vector<1x8xf32>
    %c2_98 = arith.constant 2 : index
    %c0_99 = arith.constant 0 : index
    %c0_100 = arith.constant 0 : index
    %298 = vector.load %arg2[%c2_98, %c0_99, %c0_100] : memref<3x32x8xf32, #tpu.memory_space<vmem>>, vector<1x16x8xf32>
    %299 = vector.shape_cast %298 : vector<1x16x8xf32> to vector<16x8xf32>
    %300 = vector.broadcast %297 : vector<1x8xf32> to vector<16x8xf32>
    %301 = arith.mulf %300, %299 : vector<16x8xf32>
    %302 = arith.addf %296, %301 : vector<16x8xf32>
    %c0_101 = arith.constant 0 : index
    %c0_102 = arith.constant 0 : index
    %303 = vector.load %arg4[%c0_101, %c0_102] : memref<32x8xf32, #tpu.memory_space<vmem>>, vector<16x8xf32>
    tpu.vector_store %arg4[%c0_101, %c0_102], %302 {strides = array<i32>} : memref<32x8xf32, #tpu.memory_space<vmem>>, vector<16x8xf32>,
    %304 = arith.maximumf %98, %186 : vector<1x8xf32>
    %305 = arith.maximumf %304, %274 : vector<1x8xf32>
    %306 = arith.subf %98, %305 : vector<1x8xf32>
    %307 = math.exp %306 : vector<1x8xf32>
    %308 = arith.subf %186, %305 : vector<1x8xf32>
    %309 = math.exp %308 : vector<1x8xf32>
    %310 = arith.subf %274, %305 : vector<1x8xf32>
    %311 = math.exp %310 : vector<1x8xf32>
    %312 = arith.addf %307, %309 : vector<1x8xf32>
    %313 = arith.addf %312, %311 : vector<1x8xf32>
    %314 = tpu.reciprocal %313 {approx = true} : vector<1x8xf32> -> vector<1x8xf32>
    %315 = arith.mulf %307, %314 : vector<1x8xf32>
    %c0_103 = arith.constant 0 : index
    %c16_104 = arith.constant 16 : index
    %c0_105 = arith.constant 0 : index
    %316 = vector.load %arg2[%c0_103, %c16_104, %c0_105] : memref<3x32x8xf32, #tpu.memory_space<vmem>>, vector<1x16x8xf32>
    %317 = vector.shape_cast %316 : vector<1x16x8xf32> to vector<16x8xf32>
    %318 = vector.broadcast %315 : vector<1x8xf32> to vector<16x8xf32>
    %319 = arith.mulf %318, %317 : vector<16x8xf32>
    %320 = arith.mulf %309, %314 : vector<1x8xf32>
    %c1_106 = arith.constant 1 : index
    %c16_107 = arith.constant 16 : index
    %c0_108 = arith.constant 0 : index
    %321 = vector.load %arg2[%c1_106, %c16_107, %c0_108] : memref<3x32x8xf32, #tpu.memory_space<vmem>>, vector<1x16x8xf32>
    %322 = vector.shape_cast %321 : vector<1x16x8xf32> to vector<16x8xf32>
    %323 = vector.broadcast %320 : vector<1x8xf32> to vector<16x8xf32>
    %324 = arith.mulf %323, %322 : vector<16x8xf32>
    %325 = arith.addf %319, %324 : vector<16x8xf32>
    %326 = arith.mulf %311, %314 : vector<1x8xf32>
    %c2_109 = arith.constant 2 : index
    %c16_110 = arith.constant 16 : index
    %c0_111 = arith.constant 0 : index
    %327 = vector.load %arg2[%c2_109, %c16_110, %c0_111] : memref<3x32x8xf32, #tpu.memory_space<vmem>>, vector<1x16x8xf32>
    %328 = vector.shape_cast %327 : vector<1x16x8xf32> to vector<16x8xf32>
    %329 = vector.broadcast %326 : vector<1x8xf32> to vector<16x8xf32>
    %330 = arith.mulf %329, %328 : vector<16x8xf32>
    %331 = arith.addf %325, %330 : vector<16x8xf32>
    %c16_112 = arith.constant 16 : index
    %c0_113 = arith.constant 0 : index
    %332 = vector.load %arg4[%c16_112, %c0_113] : memref<32x8xf32, #tpu.memory_space<vmem>>, vector<16x8xf32>
    tpu.vector_store %arg4[%c16_112, %c0_113], %331 {strides = array<i32>} : memref<32x8xf32, #tpu.memory_space<vmem>>, vector<16x8xf32>,
    return
  }
  func.func @transform_0(%arg0: i32) -> (i32, i32) {
    %c0_i32 = arith.constant 0 : i32
    %c0_i32_0 = arith.constant 0 : i32
    return %arg0, %c0_i32 : i32, i32
  }
  func.func @transform_1(%arg0: i32) -> (i32, i32, i32) {
    %c0_i32 = arith.constant 0 : i32
    %c0_i32_0 = arith.constant 0 : i32
    %c0_i32_1 = arith.constant 0 : i32
    return %c0_i32, %arg0, %c0_i32_0 : i32, i32, i32
  }
  func.func @transform_2(%arg0: i32) -> (i32, i32) {
    %c0_i32 = arith.constant 0 : i32
    %c0_i32_0 = arith.constant 0 : i32
    %c0_i32_1 = arith.constant 0 : i32
    return %c0_i32, %c0_i32_0 : i32, i32
  }
  func.func @transform_3(%arg0: i32) -> (i32, i32) {
    %c0_i32 = arith.constant 0 : i32
    %c0_i32_0 = arith.constant 0 : i32
    return %arg0, %c0_i32 : i32, i32
  }
}

</mosaic_0001>

<llo_original>
// kernel: tpu_custom_call.1
$region0: #{tpu_custom_call.1}
  #allocation0 [shape = 'u32[]', space=smem, size = 0x4, offset = 0x4, fixed_abs, tag = 'smem constant byte address 0x4 - core index']
  #allocation1 [shape = 'u32[72,128]{1,0:T(1,128)}', space=vmem, size = 0x9000, scoped, tag = 'internal scratch']
  %s0 = inlined_call_operand.vmem [shape: f32[128,8], index: 0, kind: input, shape index: {}]
  %s1 = inlined_call_operand.vmem [shape: f32[3,128,8], index: 1, kind: input, shape index: {}]
  %s2 = inlined_call_operand.vmem [shape: f32[80,8], index: 2, kind: input, shape index: {}]
  %s3 = inlined_call_operand.vmem [shape: f32[128,8], index: 3, kind: output, shape index: {}]
  %s4 = sld [smem:[#allocation0]]
  $region83: #{tpu_custom_call.1} parent=0
    _
  %s6 = ssub.s32 1, %s4
  %s7 = scalar_select 0, %s6, %s4
  $region1: #{tpu_custom_call.1} parent=0
    #allocation2 [shape = 'u8[98304]{0}', space=vmem, size = 0x18000, scoped, tag = 'input window, operand 1']
    loop: start=0, step=1, limit=6
    $region2: #{tpu_custom_call.1} parent=1 // loop_pre_header
      _
    $region3: #{tpu_custom_call.1} parent=1 // loop_header
      %s9 = sphi 0, %s13
      %p10 = scmp.ge.s32.totalorder %s9, 6
      %s19 = sphi 0, %s21
      %s22 = sphi 0, %s19
      %s23 = sphi 0, %s22
      %s39 = sphi 0, %s23
      %s45 = sphi 0, %s47
      %s48 = sphi 0, %s45
      %s49 = sphi 0, %s48
      %s65 = sphi 0, %s49
      %s69 = sphi 0, %s69
      %s71 = sphi 0, %s69
      %s72 = sphi 0, %s71
      %s86 = sphi 0, %s72
      %s92 = sphi 0, %s94
      %s95 = sphi 0, %s92
      %s96 = sphi 0, %s95
      %s112 = sphi 0, %s96
    $region4: #{tpu_custom_call.1} parent=1 // loop_header_branch
      %12 = sbr.rel (%p10) target = $region8
    $region5: #{tpu_custom_call.1} parent=1 // loop_body
      %s14 = ssub.s32 %s9, 1
      %s15 = ssub.s32 %s9, 2
      %s16 = sadd.s32 %s9, 1
      %s17 = ssub.s32 %s9, %s16
      %p18 = scmp.eq.s32.totalorder %s17, 0
      %s20 = sadd.s32 %s19, 1
      %s21 = scalar_select %p18, %s19, %s20
      %p24 = pneg %p18
      %p25 = scmp.eq.s32.totalorder %s9, 3
      %p26 = por %p24, %p25
      %p27 = scmp.ne.s32.totalorder %s19, %s22
      %p28 = scmp.eq.s32.totalorder %s9, 0
      %p29 = por %p27, %p28
      %p30 = scmp.ne.s32.totalorder %s19, %s22
      %p31 = scmp.eq.s32.totalorder %s14, 3
      %p32 = por %p30, %p31
      %p33 = scmp.ne.s32.totalorder %s22, %s23
      %p34 = scmp.eq.s32.totalorder %s14, 0
      %p35 = por %p33, %p34
      %p36 = scmp.ne.s32.totalorder %s22, %s23
      %p37 = scmp.eq.s32.totalorder %s15, 3
      %p38 = por %p36, %p37
      %p40 = scmp.ne.s32.totalorder %s23, %s39
      %p41 = scmp.eq.s32.totalorder %s15, 0
      %p42 = por %p40, %p41
      %s43 = ssub.s32 %s9, %s16
      %p44 = scmp.eq.s32.totalorder %s43, 0
      %s46 = sadd.s32 %s45, 1
      %s47 = scalar_select %p44, %s45, %s46
      %p50 = pneg %p44
      %p51 = scmp.eq.s32.totalorder %s9, 3
      %p52 = por %p50, %p51
      %p53 = scmp.ne.s32.totalorder %s45, %s48
      %p54 = scmp.eq.s32.totalorder %s9, 0
      %p55 = por %p53, %p54
      %p56 = scmp.ne.s32.totalorder %s45, %s48
      %p57 = scmp.eq.s32.totalorder %s14, 3
      %p58 = por %p56, %p57
      %p59 = scmp.ne.s32.totalorder %s48, %s49
      %p60 = scmp.eq.s32.totalorder %s14, 0
      %p61 = por %p59, %p60
      %p62 = scmp.ne.s32.totalorder %s48, %s49
      %p63 = scmp.eq.s32.totalorder %s15, 3
      %p64 = por %p62, %p63
      %p66 = scmp.ne.s32.totalorder %s49, %s65
      %p67 = scmp.eq.s32.totalorder %s15, 0
      %p68 = por %p66, %p67
      %s70 = sadd.s32 %s69, 1
      %p73 = scmp.eq.s32.totalorder %s9, 3
      %p74 = scmp.ne.s32.totalorder %s69, %s71
      %p75 = scmp.eq.s32.totalorder %s9, 0
      %p76 = por %p74, %p75
      %p77 = scmp.ne.s32.totalorder %s69, %s71
      %p78 = scmp.eq.s32.totalorder %s14, 3
      %p79 = por %p77, %p78
      %p80 = scmp.ne.s32.totalorder %s71, %s72
      %p81 = scmp.eq.s32.totalorder %s14, 0
      %p82 = por %p80, %p81
      %p83 = scmp.ne.s32.totalorder %s71, %s72
      %p84 = scmp.eq.s32.totalorder %s15, 3
      %p85 = por %p83, %p84
      %p87 = scmp.ne.s32.totalorder %s72, %s86
      %p88 = scmp.eq.s32.totalorder %s15, 0
      %p89 = por %p87, %p88
      %s90 = ssub.s32 %s9, %s16
      %p91 = scmp.eq.s32.totalorder %s90, 0
      %s93 = sadd.s32 %s92, 1
      %s94 = scalar_select %p91, %s92, %s93
      %p97 = pneg %p91
      %p98 = scmp.eq.s32.totalorder %s9, 3
      %p99 = por %p97, %p98
      %p100 = scmp.ne.s32.totalorder %s92, %s95
      %p101 = scmp.eq.s32.totalorder %s9, 0
      %p102 = por %p100, %p101
      %p103 = scmp.ne.s32.totalorder %s92, %s95
      %p104 = scmp.eq.s32.totalorder %s14, 3
      %p105 = por %p103, %p104
      %p106 = scmp.ne.s32.totalorder %s95, %s96
      %p107 = scmp.eq.s32.totalorder %s14, 0
      %p108 = por %p106, %p107
      %p109 = scmp.ne.s32.totalorder %s95, %s96
      %p110 = scmp.eq.s32.totalorder %s15, 3
      %p111 = por %p109, %p110
      %p113 = scmp.ne.s32.totalorder %s96, %s112
      %p114 = scmp.eq.s32.totalorder %s15, 0
      %p115 = por %p113, %p114
      %p116 = scmp.le.s32.totalorder 1, %s9
      %p117 = scmp.lt.s32.totalorder %s9, 5
      %p118 = pnand %p116, %p117
      %p119 = pneg %p118
      // Predicated region
      $region9: #{tpu_custom_call.1} parent=5 // pred_check
        _
      $region10: #{tpu_custom_call.1} parent=5 // pred_check_branch
        %121 = sbr.rel (%p118) target = $region12
      $region11: #{tpu_custom_call.1} parent=5 // pred_region
        %s122 = ssub.s32 %s9, 1
        // Predicated region
        $region13: #{tpu_custom_call.1} parent=11 // pred_check
          %p123 = pneg %p82
        $region14: #{tpu_custom_call.1} parent=11 // pred_check_branch
          %125 = sbr.rel (%p123) target = $region16
        $region15: #{tpu_custom_call.1} parent=11 // pred_region
          _
        $region16: #{tpu_custom_call.1} parent=11 // pred_fallthru
          _
      $region12: #{tpu_custom_call.1} parent=5 // pred_fallthru
        _
      %p126 = scmp.lt.s32.totalorder %s9, 4
      // Predicated region
      $region17: #{tpu_custom_call.1} parent=5 // pred_check
        %p127 = pneg %p126
      $region18: #{tpu_custom_call.1} parent=5 // pred_check_branch
        %129 = sbr.rel (%p127) target = $region20
      $region19: #{tpu_custom_call.1} parent=5 // pred_region
        // Predicated region
        $region21: #{tpu_custom_call.1} parent=19 // pred_check
          %p130 = pneg %p29
        $region22: #{tpu_custom_call.1} parent=19 // pred_check_branch
          %132 = sbr.rel (%p130) target = $region24
        $region23: #{tpu_custom_call.1} parent=19 // pred_region
          %s133 = smul.u32 4, %s9
          %p134 = scmp.lt.s32.totalorder %s133, 15
          %s135 = scalar_select %p134, %s133, 15
          %s136 = smul.addr %s135, 8
          %s137 = scalar_lea.vmem %s0, %s136
          %s138 = smul.u32 4, %s9
        $region24: #{tpu_custom_call.1} parent=19 // pred_fallthru
          _
        // Predicated region
        $region25: #{tpu_custom_call.1} parent=19 // pred_check
          %p139 = pneg %p55
        $region26: #{tpu_custom_call.1} parent=19 // pred_check_branch
          %141 = sbr.rel (%p139) target = $region28
        $region27: #{tpu_custom_call.1} parent=19 // pred_region
          %s142 = sand.u32 %s45, 1
          %s143 = sand.u32 %s45, 1
          %s144 = smul.addr %s143, 96
          %s145 = scalar_lea.vmem [#allocation2], %s144
          %s146 = smul.u32 4, %s9
          %s147 = smul.addr %s146, 8
          %s148 = scalar_lea.vmem %s1, %s147
          // Predicated region
          $region29: #{tpu_custom_call.1} parent=27 // pred_check
            _
          $region30: #{tpu_custom_call.1} parent=27 // pred_check_branch
            %150 = sbr.rel (0) target = $region32
          $region31: #{tpu_custom_call.1} parent=27 // pred_region
            // Predicated region
            $region33: #{tpu_custom_call.1} parent=31 // pred_check
              _
            $region34: #{tpu_custom_call.1} parent=31 // pred_check_branch
              %152 = sbr.rel (0) target = $region36
            $region35: #{tpu_custom_call.1} parent=31 // pred_region
              // Predicated region
              $region48: #{tpu_custom_call.1} parent=35 // pred_check
                _
              $region49: #{tpu_custom_call.1} parent=35 // pred_check_branch
                %190 = sbr.rel (0) target = $region51
              $region50: #{tpu_custom_call.1} parent=35 // pred_region
                loop: start=0, step=1, limit=1
                $region52: #{tpu_custom_call.1} parent=50 // loop_pre_header
                  _
                $region53: #{tpu_custom_call.1} parent=50 // loop_header
                  %s192 = sphi 0, %s196
                  %p193 = scmp.ge.s32.totalorder %s192, 1
                  %s197 = sphi %s148, %s148
                  %s198 = sphi %s145, %s145
                $region54: #{tpu_custom_call.1} parent=50 // loop_header_branch
                  %195 = sbr.rel (%p193) target = $region58
                $region55: #{tpu_custom_call.1} parent=50 // loop_body
                  %v199 = vld [vmem:[%s197] sm:$0xff]
                  %200 = vst [vmem:[%s198] sm:$0xff] %v199
                  %v201 = vld [vmem:[%s197 + $0x8] sm:$0xff]
                  %202 = vst [vmem:[%s198 + $0x8] sm:$0xff] %v201
                  %v203 = vld [vmem:[%s197 + $0x10] sm:$0xff]
                  %204 = vst [vmem:[%s198 + $0x10] sm:$0xff] %v203
                  %v205 = vld [vmem:[%s197 + $0x18] sm:$0xff]
                  %206 = vst [vmem:[%s198 + $0x18] sm:$0xff] %v205
                  %v207 = vld [vmem:[%s197 + $0x80] sm:$0xff]
                  %208 = vst [vmem:[%s198 + $0x20] sm:$0xff] %v207
                  %v209 = vld [vmem:[%s197 + $0x88] sm:$0xff]
                  %210 = vst [vmem:[%s198 + $0x28] sm:$0xff] %v209
                  %v211 = vld [vmem:[%s197 + $0x90] sm:$0xff]
                  %212 = vst [vmem:[%s198 + $0x30] sm:$0xff] %v211
                  %v213 = vld [vmem:[%s197 + $0x98] sm:$0xff]
                  %214 = vst [vmem:[%s198 + $0x38] sm:$0xff] %v213
                  %v215 = vld [vmem:[%s197 + $0x100] sm:$0xff]
                  %216 = vst [vmem:[%s198 + $0x40] sm:$0xff] %v215
                  %v217 = vld [vmem:[%s197 + $0x108] sm:$0xff]
                  %218 = vst [vmem:[%s198 + $0x48] sm:$0xff] %v217
                  %v219 = vld [vmem:[%s197 + $0x110] sm:$0xff]
                  %220 = vst [vmem:[%s198 + $0x50] sm:$0xff] %v219
                  %v221 = vld [vmem:[%s197 + $0x118] sm:$0xff]
                  %222 = vst [vmem:[%s198 + $0x58] sm:$0xff] %v221
                $region56: #{tpu_custom_call.1} parent=50 // loop_footer
                  %s196 = sadd.s32 1, %s192
                $region57: #{tpu_custom_call.1} parent=50 // loop_footer_branch
                  %191 = sbr.rel target = $region53
                $region58: #{tpu_custom_call.1} parent=50 // loop_exit
                  _
              $region51: #{tpu_custom_call.1} parent=35 // pred_fallthru
                _
              // Predicated region
              $region59: #{tpu_custom_call.1} parent=35 // pred_check
                _
              $region60: #{tpu_custom_call.1} parent=35 // pred_check_branch
                %224 = sbr.rel target = $region62
              $region61: #{tpu_custom_call.1} parent=35 // pred_region
                _
              $region62: #{tpu_custom_call.1} parent=35 // pred_fallthru
                _
            $region36: #{tpu_custom_call.1} parent=31 // pred_fallthru
              _
            // Predicated region
            $region37: #{tpu_custom_call.1} parent=31 // pred_check
              _
            $region38: #{tpu_custom_call.1} parent=31 // pred_check_branch
              %154 = sbr.rel target = $region40
            $region39: #{tpu_custom_call.1} parent=31 // pred_region
              %s156 = ssub.s32 256, 1
              loop: start=0, step=1, limit=1
              $region41: #{tpu_custom_call.1} parent=39 // loop_pre_header
                _
              $region42: #{tpu_custom_call.1} parent=39 // loop_header
                %s158 = sphi 0, %s162
                %p159 = scmp.ge.s32.totalorder %s158, 1
                %s163 = sphi %s148, %s148
                %s164 = sphi %s145, %s145
              $region43: #{tpu_custom_call.1} parent=39 // loop_header_branch
                %161 = sbr.rel (%p159) target = $region47
              $region44: #{tpu_custom_call.1} parent=39 // loop_body
                %v165 = vld [vmem:[%s163] sm:%s156]
                %166 = vst [vmem:[%s164] sm:%s156] %v165
                %v167 = vld [vmem:[%s163 + $0x8] sm:%s156]
                %168 = vst [vmem:[%s164 + $0x8] sm:%s156] %v167
                %v169 = vld [vmem:[%s163 + $0x10] sm:%s156]
                %170 = vst [vmem:[%s164 + $0x10] sm:%s156] %v169
                %v171 = vld [vmem:[%s163 + $0x18] sm:%s156]
                %172 = vst [vmem:[%s164 + $0x18] sm:%s156] %v171
                %v173 = vld [vmem:[%s163 + $0x80] sm:%s156]
                %174 = vst [vmem:[%s164 + $0x20] sm:%s156] %v173
                %v175 = vld [vmem:[%s163 + $0x88] sm:%s156]
                %176 = vst [vmem:[%s164 + $0x28] sm:%s156] %v175
                %v177 = vld [vmem:[%s163 + $0x90] sm:%s156]
                %178 = vst [vmem:[%s164 + $0x30] sm:%s156] %v177
                %v179 = vld [vmem:[%s163 + $0x98] sm:%s156]
                %180 = vst [vmem:[%s164 + $0x38] sm:%s156] %v179
                %v181 = vld [vmem:[%s163 + $0x100] sm:%s156]
                %182 = vst [vmem:[%s164 + $0x40] sm:%s156] %v181
                %v183 = vld [vmem:[%s163 + $0x108] sm:%s156]
                %184 = vst [vmem:[%s164 + $0x48] sm:%s156] %v183
                %v185 = vld [vmem:[%s163 + $0x110] sm:%s156]
                %186 = vst [vmem:[%s164 + $0x50] sm:%s156] %v185
                %v187 = vld [vmem:[%s163 + $0x118] sm:%s156]
                %188 = vst [vmem:[%s164 + $0x58] sm:%s156] %v187
              $region45: #{tpu_custom_call.1} parent=39 // loop_footer
                %s162 = sadd.s32 1, %s158
              $region46: #{tpu_custom_call.1} parent=39 // loop_footer_branch
                %157 = sbr.rel target = $region42
              $region47: #{tpu_custom_call.1} parent=39 // loop_exit
                _
            $region40: #{tpu_custom_call.1} parent=31 // pred_fallthru
              _
          $region32: #{tpu_custom_call.1} parent=27 // pred_fallthru
            _
          %225 = vnop
        $region28: #{tpu_custom_call.1} parent=19 // pred_fallthru
          _
      $region20: #{tpu_custom_call.1} parent=5 // pred_fallthru
        _
      %p226 = scmp.le.s32.totalorder 1, %s9
      %p227 = scmp.lt.s32.totalorder %s9, 5
      %p228 = pnand %p226, %p227
      %p229 = pneg %p228
      // Predicated region
      $region63: #{tpu_custom_call.1} parent=5 // pred_check
        _
      $region64: #{tpu_custom_call.1} parent=5 // pred_check_branch
        %231 = sbr.rel (%p228) target = $region66
      $region65: #{tpu_custom_call.1} parent=5 // pred_region
        %s232 = ssub.s32 %s9, 1
        %s233 = sand.u32 %s48, 1
        %s234 = sand.u32 %s48, 1
        %s235 = smul.addr %s234, 96
        %s236 = scalar_lea.vmem [#allocation2], %s235
        // Predicated region
        $region67: #{tpu_custom_call.1} parent=65 // pred_check
          %p237 = pneg %p61
        $region68: #{tpu_custom_call.1} parent=65 // pred_check_branch
          %239 = sbr.rel (%p237) target = $region70
        $region69: #{tpu_custom_call.1} parent=65 // pred_region
          _
        $region70: #{tpu_custom_call.1} parent=65 // pred_fallthru
          _
        %s240 = smul.u32 4, %s14
        %p241 = scmp.lt.s32.totalorder %s240, 15
        %s242 = scalar_select %p241, %s240, 15
        %s243 = smul.addr %s242, 8
        %s244 = scalar_lea.vmem %s0, %s243
        %p245 = pneg %p35
        %p246 = pneg %p32
        %s247 = sand.u32 %s48, 1
        %s248 = sand.u32 %s48, 1
        %s249 = smul.addr %s248, 96
        %s250 = scalar_lea.vmem [#allocation2], %s249
        %p251 = pneg %p61
        %p252 = pneg %p58
        %p253 = pneg %p82
        %p254 = pneg %p79
        %p255 = pneg %p108
        %p256 = pneg %p105
        %s257 = smul.u32 4, %s14
        %p258 = scmp.lt.s32.totalorder %s257, 15
        %s259 = scalar_select %p258, %s257, 15
        %s260 = smul.addr %s259, 8
        %s261 = scalar_lea.vmem %s3, %s260
        %s262 = smul.u32 4, %s14
        %p263 = scmp.lt.s32.totalorder %s262, 15
        %s264 = scalar_select %p263, %s262, 15
        %s265 = smul.addr %s264, 8
        %s266 = scalar_lea.vmem %s0, %s265
        %s267 = smul.u32 4, %s14
        %s268 = smul.u32 4, %s14
        %s269 = smul.u32 4, %s14
        %p270 = scmp.lt.s32.totalorder %s269, 15
        %s271 = scalar_select %p270, %s269, 15
        %s272 = smul.addr %s271, 8
        %s273 = scalar_lea.vmem %s3, %s272
        %s274 = smul.u32 4, %s14
        %v275 = vld [vmem:[%s2 + $0x30] sm:$0xff]
        %v276 = vld [vmem:[%s2 + $0x38] sm:$0xff]
        %v277 = vld [vmem:[%s2 + $0x40] sm:$0xff]
        %v278 = vld [vmem:[%s2 + $0x48] sm:$0xff]
        %vm279 = vcmask 64512
        %v280 = vsel %vm279, %v275, 0.0
        %v281 = vsel %vm279, %v276, 0.0
        %v282 = vadd.f32 %v280, %v281
        %v283 = vrot.slane %v282, 4
        %v284 = vadd.f32 %v282, %v283
        %v285 = vrot.slane %v284, 2
        %v286 = vadd.f32 %v284, %v285
        %v287 = vrot.slane %v286, 1
        %v288 = vadd.f32 %v286, %v287
        %v289 = vrcp.pop 16.0
        %v290 = vmul.f32 16.0, %v289
        %v291 = vsub.f32 1.0, %v290
        %v292 = vmul.f32 %v289, %v291
        %v293 = vadd.f32 %v289, %v292
        %vm294 = vweird.f32 %v289
        %v295 = vsel %vm294, %v289, %v293
        %v296 = vmul.f32 %v288, %v295
        %v297 = vsel %vm279, %v277, 0.0
        %v298 = vsel %vm279, %v278, 0.0
        %v299 = vadd.f32 %v297, %v298
        %v300 = vrot.slane %v299, 4
        %v301 = vadd.f32 %v299, %v300
        %v302 = vrot.slane %v301, 2
        %v303 = vadd.f32 %v301, %v302
        %v304 = vrot.slane %v303, 1
        %v305 = vadd.f32 %v303, %v304
        %v306 = vmul.f32 %v305, %v295
        %v307 = vld [vmem:[%s266] sm:$0xff]
        %v308 = vld [vmem:[%s266 + $0x8] sm:$0xff]
        %v309 = vld [vmem:[%s266 + $0x10] sm:$0xff]
        %v310 = vld [vmem:[%s266 + $0x18] sm:$0xff]
        %v311 = vld [vmem:[%s2] sm:$0xff]
        %v312 = vld [vmem:[%s2 + $0x18] sm:$0xff]
        %v313 = vld [vmem:[%s236] sm:$0xff]
        %v314 = vld [vmem:[%s236 + $0x8] sm:$0xff]
        %v315 = vld [vmem:[%s236 + $0x10] sm:$0xff]
        %v316 = vld [vmem:[%s236 + $0x18] sm:$0xff]
        %v318 = vsel %vm279, %v307, 0
        %v321 = vsel %vm279, %v308, 0
        %v324 = vsel %vm279, %v309, 0
        %v327 = vsel %vm279, %v310, 0
        %329 = vmatpush.msra.mxu0 0.0
        %330 = vmatpush.msra.mxu0 0.0
        %331 = vmatpush.msra.mxu0 0.0
        %332 = vmatpush.msra.mxu0 0.0
        %333 = vmatpush.msra.mxu0 0.0
        %334 = vmatpush.msra.mxu0 0.0
        %335 = vmatpush.msra.mxu0 0.0
        %336 = vmatpush.msra.mxu0 0.0
        %337 = vmatpush.msra.mxu0 0.0
        %338 = vmatpush.msra.mxu0 0.0
        %339 = vmatpush.msra.mxu0 0.0
        %340 = vmatpush.msra.mxu0 0.0
        %341 = vmatpush.msra.mxu0 0.0
        %342 = vmatpush.msra.mxu0 0.0
        %343 = vmatpush.msra.mxu0 0.0
        %344 = vmatpush.msra.mxu0 %v311
        %345 = vmatmul.f32.gmra.mxu0 %v318
        %v346 = vpop.f32.mrf.mxu0
        %v347 = vadd.f32 0.0, %v346
        %348 = vmatmul.f32.gmra.mxu0 %v321
        %v349 = vpop.f32.mrf.mxu0
        %v350 = vadd.f32 0.0, %v349
        %351 = vmatmul.f32.gmra.mxu0 %v324
        %v352 = vpop.f32.mrf.mxu0
        %v353 = vadd.f32 0.0, %v352
        %354 = vmatmul.f32.gmra.mxu0 %v327
        %v355 = vpop.f32.mrf.mxu0
        %v356 = vadd.f32 0.0, %v355
        %357 = vdwg.mxu0
        %v359 = vsel %vm279, %v313, 0
        %v362 = vsel %vm279, %v314, 0
        %v365 = vsel %vm279, %v315, 0
        %v368 = vsel %vm279, %v316, 0
        %370 = vmatpush.msra.mxu0 0.0
        %371 = vmatpush.msra.mxu0 0.0
        %372 = vmatpush.msra.mxu0 0.0
        %373 = vmatpush.msra.mxu0 0.0
        %374 = vmatpush.msra.mxu0 0.0
        %375 = vmatpush.msra.mxu0 0.0
        %376 = vmatpush.msra.mxu0 0.0
        %377 = vmatpush.msra.mxu0 0.0
        %378 = vmatpush.msra.mxu0 0.0
        %379 = vmatpush.msra.mxu0 0.0
        %380 = vmatpush.msra.mxu0 0.0
        %381 = vmatpush.msra.mxu0 0.0
        %382 = vmatpush.msra.mxu0 0.0
        %383 = vmatpush.msra.mxu0 0.0
        %384 = vmatpush.msra.mxu0 0.0
        %385 = vmatpush.msra.mxu0 %v312
        %386 = vmatmul.f32.gmra.mxu0 %v359
        %v387 = vpop.f32.mrf.mxu0
        %v388 = vadd.f32 0.0, %v387
        %389 = vmatmul.f32.gmra.mxu0 %v362
        %v390 = vpop.f32.mrf.mxu0
        %v391 = vadd.f32 0.0, %v390
        %392 = vmatmul.f32.gmra.mxu0 %v365
        %v393 = vpop.f32.mrf.mxu0
        %v394 = vadd.f32 0.0, %v393
        %395 = vmatmul.f32.gmra.mxu0 %v368
        %v396 = vpop.f32.mrf.mxu0
        %v397 = vadd.f32 0.0, %v396
        %398 = vdwg.mxu0
        %v400 = vsel %vm279, %v347, 0
        %v403 = vsel %vm279, %v350, 0
        %405 = vmatpush.xpose.msra.mxu0 0.0
        %406 = vmatpush.xpose.msra.mxu0 0.0
        %407 = vmatpush.xpose.msra.mxu0 0.0
        %408 = vmatpush.xpose.msra.mxu0 0.0
        %409 = vmatpush.xpose.msra.mxu0 0.0
        %410 = vmatpush.xpose.msra.mxu0 0.0
        %411 = vmatpush.xpose.msra.mxu0 0.0
        %412 = vmatpush.xpose.msra.mxu0 0.0
        %413 = vmatpush.xpose.msra.mxu0 0.0
        %414 = vmatpush.xpose.msra.mxu0 0.0
        %415 = vmatpush.xpose.msra.mxu0 0.0
        %416 = vmatpush.xpose.msra.mxu0 0.0
        %417 = vmatpush.xpose.msra.mxu0 0.0
        %418 = vmatpush.xpose.msra.mxu0 0.0
        %419 = vmatpush.xpose.msra.mxu0 %v362
        %420 = vmatpush.xpose.msra.mxu0 %v359
        %421 = vmatmul.f32.gmra.mxu0 %v400
        %v422 = vpop.f32.mrf.mxu0
        %v423 = vadd.f32 0.0, %v422
        %424 = vmatmul.f32.gmra.mxu0 %v403
        %v425 = vpop.f32.mrf.mxu0
        %v426 = vadd.f32 0.0, %v425
        %427 = vdwg.mxu0
        %vm428 = vcmask 130048
        %v429 = vsel %vm428, %v423, -inf
        %430 = vmax.xlane.f32.xlu0 %v429
        %v431 = vpop.xlane.xlu0 %430
        %v432 = vsel %vm428, %v426, -inf
        %433 = vmax.xlane.f32.xlu0 %v432
        %v434 = vpop.xlane.xlu0 %433
        %v435 = vsub.f32 %v423, %v431
        %v436 = vsub.f32 %v426, %v434
        %v437 = vmul.f32 %v435, 1.442695
        %v438 = vpow.pop %v437
        %v439 = vmul.f32 %v436, 1.442695
        %v440 = vpow.pop %v439
        %v441 = vsel %vm428, %v438, 0.0
        %442 = vadd.xlane.f32.xlu0 %v441
        %v443 = vpop.xlane.xlu0 %442
        %v444 = vsel %vm428, %v440, 0.0
        %445 = vadd.xlane.f32.xlu0 %v444
        %v446 = vpop.xlane.xlu0 %445
        %v447 = vrcp.pop %v443
        %v448 = vrcp.pop %v446
        %v449 = vmul.f32 %v438, %v447
        %v450 = vmul.f32 %v440, %v448
        %v452 = vsel %vm428, %v449, 0
        %v455 = vsel %vm428, %v450, 0
        %457 = vmatpush.msra.mxu0 0.0
        %458 = vmatpush.msra.mxu0 0.0
        %459 = vmatpush.msra.mxu0 0.0
        %460 = vmatpush.msra.mxu0 0.0
        %461 = vmatpush.msra.mxu0 0.0
        %462 = vmatpush.msra.mxu0 0.0
        %463 = vmatpush.msra.mxu0 0.0
        %464 = vmatpush.msra.mxu0 0.0
        %465 = vmatpush.msra.mxu0 0.0
        %466 = vmatpush.msra.mxu0 0.0
        %467 = vmatpush.msra.mxu0 0.0
        %468 = vmatpush.msra.mxu0 0.0
        %469 = vmatpush.msra.mxu0 0.0
        %470 = vmatpush.msra.mxu0 0.0
        %471 = vmatpush.msra.mxu0 %v391
        %472 = vmatpush.msra.mxu0 %v388
        %473 = vmatmul.f32.gmra.mxu0 %v452
        %v474 = vpop.f32.mrf.mxu0
        %v475 = vadd.f32 0.0, %v474
        %476 = vmatmul.f32.gmra.mxu0 %v455
        %v477 = vpop.f32.mrf.mxu0
        %v478 = vadd.f32 0.0, %v477
        %479 = vdwg.mxu0
        %v480 = vsel %vm279, %v475, 0.0
        %v481 = vsel %vm279, %v478, 0.0
        %v482 = vadd.f32 %v480, %v481
        %483 = vadd.xlane.f32.xlu0 %v482
        %v484 = vpop.xlane.xlu0 %483
        %v485 = vrot.slane %v484, 4
        %v486 = vadd.f32 %v484, %v485
        %v487 = vrot.slane %v486, 2
        %v488 = vadd.f32 %v486, %v487
        %v489 = vrot.slane %v488, 1
        %v490 = vadd.f32 %v488, %v489
        %s491 = vtos %v490
        %v492 = vrcp.pop 128.0
        %v493 = vmul.f32 128.0, %v492
        %v494 = vsub.f32 1.0, %v493
        %v495 = vmul.f32 %v492, %v494
        %v496 = vadd.f32 %v492, %v495
        %vm497 = vweird.f32 %v492
        %v498 = vsel %vm497, %v492, %v496
        %s499 = vtos %v498
        %s500 = smul.f32 %s491, %s499
        %v501 = vmul.f32 %v475, %v475
        %v502 = vmul.f32 %v478, %v478
        %v503 = vsel %vm279, %v501, 0.0
        %v504 = vsel %vm279, %v502, 0.0
        %v505 = vadd.f32 %v503, %v504
        %506 = vadd.xlane.f32.xlu0 %v505
        %v507 = vpop.xlane.xlu0 %506
        %v508 = vrot.slane %v507, 4
        %v509 = vadd.f32 %v507, %v508
        %v510 = vrot.slane %v509, 2
        %v511 = vadd.f32 %v509, %v510
        %v512 = vrot.slane %v511, 1
        %v513 = vadd.f32 %v511, %v512
        %s514 = vtos %v513
        %v515 = vrcp.pop 128.0
        %v516 = vmul.f32 128.0, %v515
        %v517 = vsub.f32 1.0, %v516
        %v518 = vmul.f32 %v515, %v517
        %v519 = vadd.f32 %v515, %v518
        %vm520 = vweird.f32 %v515
        %v521 = vsel %vm520, %v515, %v519
        %s522 = vtos %v521
        %s523 = smul.f32 %s514, %s522
        %s524 = smul.f32 %s500, %s500
        %s525 = ssub.f32 %s523, %s524
        %s526 = sadd.f32 %s525, 1e-05
        %v527 = vstv %s526
        %v528 = vrsqrt.pop %v527
        %v529 = vmul.f32 %v528, %v527
        %v530 = vmul.f32 %v529, %v528
        %v531 = vmul.f32 0.5, %v530
        %v532 = vsub.f32 1.5, %v531
        %v533 = vmul.f32 %v528, %v532
        %vm534 = vweird.f32 %v527
        %vm535 = vweird.f32 %v528
        %vm536 = vmor %vm534, %vm535
        %v537 = vsel %vm536, %v528, %v533
        %s538 = vtos %v537
        %v539 = vmul.f32 %v475, %v275
        %v540 = vmul.f32 %v478, %v276
        %v541 = vsel %vm279, %v539, 0.0
        %v542 = vsel %vm279, %v540, 0.0
        %v543 = vadd.f32 %v541, %v542
        %v544 = vrot.slane %v543, 4
        %v545 = vadd.f32 %v543, %v544
        %v546 = vrot.slane %v545, 2
        %v547 = vadd.f32 %v545, %v546
        %v548 = vrot.slane %v547, 1
        %v549 = vadd.f32 %v547, %v548
        %v550 = vmul.f32 %v549, %v295
        %v551 = vstv %s500
        %v552 = vmul.f32 %v551, %v296
        %v553 = vsub.f32 %v550, %v552
        %v554 = vstv %s538
        %v555 = vmul.f32 %v554, %v553
        %v556 = vadd.f32 %v555, %v306
        %v558 = vsel %vm279, %v353, 0
        %v561 = vsel %vm279, %v356, 0
        %563 = vmatpush.xpose.msra.mxu0 0.0
        %564 = vmatpush.xpose.msra.mxu0 0.0
        %565 = vmatpush.xpose.msra.mxu0 0.0
        %566 = vmatpush.xpose.msra.mxu0 0.0
        %567 = vmatpush.xpose.msra.mxu0 0.0
        %568 = vmatpush.xpose.msra.mxu0 0.0
        %569 = vmatpush.xpose.msra.mxu0 0.0
        %570 = vmatpush.xpose.msra.mxu0 0.0
        %571 = vmatpush.xpose.msra.mxu0 0.0
        %572 = vmatpush.xpose.msra.mxu0 0.0
        %573 = vmatpush.xpose.msra.mxu0 0.0
        %574 = vmatpush.xpose.msra.mxu0 0.0
        %575 = vmatpush.xpose.msra.mxu0 0.0
        %576 = vmatpush.xpose.msra.mxu0 0.0
        %577 = vmatpush.xpose.msra.mxu0 %v368
        %578 = vmatpush.xpose.msra.mxu0 %v365
        %579 = vmatmul.f32.gmra.mxu0 %v558
        %v580 = vpop.f32.mrf.mxu0
        %v581 = vadd.f32 0.0, %v580
        %582 = vmatmul.f32.gmra.mxu0 %v561
        %v583 = vpop.f32.mrf.mxu0
        %v584 = vadd.f32 0.0, %v583
        %585 = vdwg.mxu0
        %v586 = vsel %vm428, %v581, -inf
        %587 = vmax.xlane.f32.xlu0 %v586
        %v588 = vpop.xlane.xlu0 %587
        %v589 = vsel %vm428, %v584, -inf
        %590 = vmax.xlane.f32.xlu0 %v589
        %v591 = vpop.xlane.xlu0 %590
        %v592 = vsub.f32 %v581, %v588
        %v593 = vsub.f32 %v584, %v591
        %v594 = vmul.f32 %v592, 1.442695
        %v595 = vpow.pop %v594
        %v596 = vmul.f32 %v593, 1.442695
        %v597 = vpow.pop %v596
        %v598 = vsel %vm428, %v595, 0.0
        %599 = vadd.xlane.f32.xlu0 %v598
        %v600 = vpop.xlane.xlu0 %599
        %v601 = vsel %vm428, %v597, 0.0
        %602 = vadd.xlane.f32.xlu0 %v601
        %v603 = vpop.xlane.xlu0 %602
        %v604 = vrcp.pop %v600
        %v605 = vrcp.pop %v603
        %v606 = vmul.f32 %v595, %v604
        %v607 = vmul.f32 %v597, %v605
        %v609 = vsel %vm428, %v606, 0
        %v612 = vsel %vm428, %v607, 0
        %614 = vmatpush.msra.mxu0 0.0
        %615 = vmatpush.msra.mxu0 0.0
        %616 = vmatpush.msra.mxu0 0.0
        %617 = vmatpush.msra.mxu0 0.0
        %618 = vmatpush.msra.mxu0 0.0
        %619 = vmatpush.msra.mxu0 0.0
        %620 = vmatpush.msra.mxu0 0.0
        %621 = vmatpush.msra.mxu0 0.0
        %622 = vmatpush.msra.mxu0 0.0
        %623 = vmatpush.msra.mxu0 0.0
        %624 = vmatpush.msra.mxu0 0.0
        %625 = vmatpush.msra.mxu0 0.0
        %626 = vmatpush.msra.mxu0 0.0
        %627 = vmatpush.msra.mxu0 0.0
        %628 = vmatpush.msra.mxu0 %v397
        %629 = vmatpush.msra.mxu0 %v394
        %630 = vmatmul.f32.gmra.mxu0 %v609
        %v631 = vpop.f32.mrf.mxu0
        %v632 = vadd.f32 0.0, %v631
        %633 = vmatmul.f32.gmra.mxu0 %v612
        %v634 = vpop.f32.mrf.mxu0
        %v635 = vadd.f32 0.0, %v634
        %636 = vdwg.mxu0
        %v637 = vsel %vm279, %v632, 0.0
        %v638 = vsel %vm279, %v635, 0.0
        %v639 = vadd.f32 %v637, %v638
        %640 = vadd.xlane.f32.xlu0 %v639
        %v641 = vpop.xlane.xlu0 %640
        %v642 = vrot.slane %v641, 4
        %v643 = vadd.f32 %v641, %v642
        %v644 = vrot.slane %v643, 2
        %v645 = vadd.f32 %v643, %v644
        %v646 = vrot.slane %v645, 1
        %v647 = vadd.f32 %v645, %v646
        %s648 = vtos %v647
        %v649 = vrcp.pop 128.0
        %v650 = vmul.f32 128.0, %v649
        %v651 = vsub.f32 1.0, %v650
        %v652 = vmul.f32 %v649, %v651
        %v653 = vadd.f32 %v649, %v652
        %vm654 = vweird.f32 %v649
        %v655 = vsel %vm654, %v649, %v653
        %s656 = vtos %v655
        %s657 = smul.f32 %s648, %s656
        %v658 = vmul.f32 %v632, %v632
        %v659 = vmul.f32 %v635, %v635
        %v660 = vsel %vm279, %v658, 0.0
        %v661 = vsel %vm279, %v659, 0.0
        %v662 = vadd.f32 %v660, %v661
        %663 = vadd.xlane.f32.xlu0 %v662
        %v664 = vpop.xlane.xlu0 %663
        %v665 = vrot.slane %v664, 4
        %v666 = vadd.f32 %v664, %v665
        %v667 = vrot.slane %v666, 2
        %v668 = vadd.f32 %v666, %v667
        %v669 = vrot.slane %v668, 1
        %v670 = vadd.f32 %v668, %v669
        %s671 = vtos %v670
        %v672 = vrcp.pop 128.0
        %v673 = vmul.f32 128.0, %v672
        %v674 = vsub.f32 1.0, %v673
        %v675 = vmul.f32 %v672, %v674
        %v676 = vadd.f32 %v672, %v675
        %vm677 = vweird.f32 %v672
        %v678 = vsel %vm677, %v672, %v676
        %s679 = vtos %v678
        %s680 = smul.f32 %s671, %s679
        %s681 = smul.f32 %s657, %s657
        %s682 = ssub.f32 %s680, %s681
        %s683 = sadd.f32 %s682, 1e-05
        %v684 = vstv %s683
        %v685 = vrsqrt.pop %v684
        %v686 = vmul.f32 %v685, %v684
        %v687 = vmul.f32 %v686, %v685
        %v688 = vmul.f32 0.5, %v687
        %v689 = vsub.f32 1.5, %v688
        %v690 = vmul.f32 %v685, %v689
        %vm691 = vweird.f32 %v684
        %vm692 = vweird.f32 %v685
        %vm693 = vmor %vm691, %vm692
        %v694 = vsel %vm693, %v685, %v690
        %s695 = vtos %v694
        %v696 = vmul.f32 %v632, %v275
        %v697 = vmul.f32 %v635, %v276
        %v698 = vsel %vm279, %v696, 0.0
        %v699 = vsel %vm279, %v697, 0.0
        %v700 = vadd.f32 %v698, %v699
        %v701 = vrot.slane %v700, 4
        %v702 = vadd.f32 %v700, %v701
        %v703 = vrot.slane %v702, 2
        %v704 = vadd.f32 %v702, %v703
        %v705 = vrot.slane %v704, 1
        %v706 = vadd.f32 %v704, %v705
        %v707 = vmul.f32 %v706, %v295
        %v708 = vstv %s657
        %v709 = vmul.f32 %v708, %v296
        %v710 = vsub.f32 %v707, %v709
        %v711 = vstv %s695
        %v712 = vmul.f32 %v711, %v710
        %v713 = vadd.f32 %v712, %v306
        %v714 = vld [vmem:[%s2 + $0x8] sm:$0xff]
        %v715 = vld [vmem:[%s2 + $0x20] sm:$0xff]
        %s716 = scalar_lea.vmem %s236, 32 [#allocation2]
        %v717 = vld [vmem:[%s716] sm:$0xff]
        %v718 = vld [vmem:[%s716 + $0x8] sm:$0xff]
        %v719 = vld [vmem:[%s716 + $0x10] sm:$0xff]
        %v720 = vld [vmem:[%s716 + $0x18] sm:$0xff]
        %721 = vmatpush.msra.mxu0 0.0
        %722 = vmatpush.msra.mxu0 0.0
        %723 = vmatpush.msra.mxu0 0.0
        %724 = vmatpush.msra.mxu0 0.0
        %725 = vmatpush.msra.mxu0 0.0
        %726 = vmatpush.msra.mxu0 0.0
        %727 = vmatpush.msra.mxu0 0.0
        %728 = vmatpush.msra.mxu0 0.0
        %729 = vmatpush.msra.mxu0 0.0
        %730 = vmatpush.msra.mxu0 0.0
        %731 = vmatpush.msra.mxu0 0.0
        %732 = vmatpush.msra.mxu0 0.0
        %733 = vmatpush.msra.mxu0 0.0
        %734 = vmatpush.msra.mxu0 0.0
        %735 = vmatpush.msra.mxu0 0.0
        %736 = vmatpush.msra.mxu0 %v714
        %737 = vmatmul.f32.gmra.mxu0 %v318
        %v738 = vpop.f32.mrf.mxu0
        %v739 = vadd.f32 0.0, %v738
        %740 = vmatmul.f32.gmra.mxu0 %v321
        %v741 = vpop.f32.mrf.mxu0
        %v742 = vadd.f32 0.0, %v741
        %743 = vmatmul.f32.gmra.mxu0 %v324
        %v744 = vpop.f32.mrf.mxu0
        %v745 = vadd.f32 0.0, %v744
        %746 = vmatmul.f32.gmra.mxu0 %v327
        %v747 = vpop.f32.mrf.mxu0
        %v748 = vadd.f32 0.0, %v747
        %749 = vdwg.mxu0
        %v751 = vsel %vm279, %v717, 0
        %v754 = vsel %vm279, %v718, 0
        %v757 = vsel %vm279, %v719, 0
        %v760 = vsel %vm279, %v720, 0
        %762 = vmatpush.msra.mxu0 0.0
        %763 = vmatpush.msra.mxu0 0.0
        %764 = vmatpush.msra.mxu0 0.0
        %765 = vmatpush.msra.mxu0 0.0
        %766 = vmatpush.msra.mxu0 0.0
        %767 = vmatpush.msra.mxu0 0.0
        %768 = vmatpush.msra.mxu0 0.0
        %769 = vmatpush.msra.mxu0 0.0
        %770 = vmatpush.msra.mxu0 0.0
        %771 = vmatpush.msra.mxu0 0.0
        %772 = vmatpush.msra.mxu0 0.0
        %773 = vmatpush.msra.mxu0 0.0
        %774 = vmatpush.msra.mxu0 0.0
        %775 = vmatpush.msra.mxu0 0.0
        %776 = vmatpush.msra.mxu0 0.0
        %777 = vmatpush.msra.mxu0 %v715
        %778 = vmatmul.f32.gmra.mxu0 %v751
        %v779 = vpop.f32.mrf.mxu0
        %v780 = vadd.f32 0.0, %v779
        %781 = vmatmul.f32.gmra.mxu0 %v754
        %v782 = vpop.f32.mrf.mxu0
        %v783 = vadd.f32 0.0, %v782
        %784 = vmatmul.f32.gmra.mxu0 %v757
        %v785 = vpop.f32.mrf.mxu0
        %v786 = vadd.f32 0.0, %v785
        %787 = vmatmul.f32.gmra.mxu0 %v760
        %v788 = vpop.f32.mrf.mxu0
        %v789 = vadd.f32 0.0, %v788
        %790 = vdwg.mxu0
        %v792 = vsel %vm279, %v739, 0
        %v795 = vsel %vm279, %v742, 0
        %797 = vmatpush.xpose.msra.mxu0 0.0
        %798 = vmatpush.xpose.msra.mxu0 0.0
        %799 = vmatpush.xpose.msra.mxu0 0.0
        %800 = vmatpush.xpose.msra.mxu0 0.0
        %801 = vmatpush.xpose.msra.mxu0 0.0
        %802 = vmatpush.xpose.msra.mxu0 0.0
        %803 = vmatpush.xpose.msra.mxu0 0.0
        %804 = vmatpush.xpose.msra.mxu0 0.0
        %805 = vmatpush.xpose.msra.mxu0 0.0
        %806 = vmatpush.xpose.msra.mxu0 0.0
        %807 = vmatpush.xpose.msra.mxu0 0.0
        %808 = vmatpush.xpose.msra.mxu0 0.0
        %809 = vmatpush.xpose.msra.mxu0 0.0
        %810 = vmatpush.xpose.msra.mxu0 0.0
        %811 = vmatpush.xpose.msra.mxu0 %v754
        %812 = vmatpush.xpose.msra.mxu0 %v751
        %813 = vmatmul.f32.gmra.mxu0 %v792
        %v814 = vpop.f32.mrf.mxu0
        %v815 = vadd.f32 0.0, %v814
        %816 = vmatmul.f32.gmra.mxu0 %v795
        %v817 = vpop.f32.mrf.mxu0
        %v818 = vadd.f32 0.0, %v817
        %819 = vdwg.mxu0
        %v820 = vsel %vm428, %v815, -inf
        %821 = vmax.xlane.f32.xlu0 %v820
        %v822 = vpop.xlane.xlu0 %821
        %v823 = vsel %vm428, %v818, -inf
        %824 = vmax.xlane.f32.xlu0 %v823
        %v825 = vpop.xlane.xlu0 %824
        %v826 = vsub.f32 %v815, %v822
        %v827 = vsub.f32 %v818, %v825
        %v828 = vmul.f32 %v826, 1.442695
        %v829 = vpow.pop %v828
        %v830 = vmul.f32 %v827, 1.442695
        %v831 = vpow.pop %v830
        %v832 = vsel %vm428, %v829, 0.0
        %833 = vadd.xlane.f32.xlu0 %v832
        %v834 = vpop.xlane.xlu0 %833
        %v835 = vsel %vm428, %v831, 0.0
        %836 = vadd.xlane.f32.xlu0 %v835
        %v837 = vpop.xlane.xlu0 %836
        %v838 = vrcp.pop %v834
        %v839 = vrcp.pop %v837
        %v840 = vmul.f32 %v829, %v838
        %v841 = vmul.f32 %v831, %v839
        %v843 = vsel %vm428, %v840, 0
        %v846 = vsel %vm428, %v841, 0
        %848 = vmatpush.msra.mxu0 0.0
        %849 = vmatpush.msra.mxu0 0.0
        %850 = vmatpush.msra.mxu0 0.0
        %851 = vmatpush.msra.mxu0 0.0
        %852 = vmatpush.msra.mxu0 0.0
        %853 = vmatpush.msra.mxu0 0.0
        %854 = vmatpush.msra.mxu0 0.0
        %855 = vmatpush.msra.mxu0 0.0
        %856 = vmatpush.msra.mxu0 0.0
        %857 = vmatpush.msra.mxu0 0.0
        %858 = vmatpush.msra.mxu0 0.0
        %859 = vmatpush.msra.mxu0 0.0
        %860 = vmatpush.msra.mxu0 0.0
        %861 = vmatpush.msra.mxu0 0.0
        %862 = vmatpush.msra.mxu0 %v783
        %863 = vmatpush.msra.mxu0 %v780
        %864 = vmatmul.f32.gmra.mxu0 %v843
        %v865 = vpop.f32.mrf.mxu0
        %v866 = vadd.f32 0.0, %v865
        %867 = vmatmul.f32.gmra.mxu0 %v846
        %v868 = vpop.f32.mrf.mxu0
        %v869 = vadd.f32 0.0, %v868
        %870 = vdwg.mxu0
        %v871 = vsel %vm279, %v866, 0.0
        %v872 = vsel %vm279, %v869, 0.0
        %v873 = vadd.f32 %v871, %v872
        %874 = vadd.xlane.f32.xlu0 %v873
        %v875 = vpop.xlane.xlu0 %874
        %v876 = vrot.slane %v875, 4
        %v877 = vadd.f32 %v875, %v876
        %v878 = vrot.slane %v877, 2
        %v879 = vadd.f32 %v877, %v878
        %v880 = vrot.slane %v879, 1
        %v881 = vadd.f32 %v879, %v880
        %s882 = vtos %v881
        %v883 = vrcp.pop 128.0
        %v884 = vmul.f32 128.0, %v883
        %v885 = vsub.f32 1.0, %v884
        %v886 = vmul.f32 %v883, %v885
        %v887 = vadd.f32 %v883, %v886
        %vm888 = vweird.f32 %v883
        %v889 = vsel %vm888, %v883, %v887
        %s890 = vtos %v889
        %s891 = smul.f32 %s882, %s890
        %v892 = vmul.f32 %v866, %v866
        %v893 = vmul.f32 %v869, %v869
        %v894 = vsel %vm279, %v892, 0.0
        %v895 = vsel %vm279, %v893, 0.0
        %v896 = vadd.f32 %v894, %v895
        %897 = vadd.xlane.f32.xlu0 %v896
        %v898 = vpop.xlane.xlu0 %897
        %v899 = vrot.slane %v898, 4
        %v900 = vadd.f32 %v898, %v899
        %v901 = vrot.slane %v900, 2
        %v902 = vadd.f32 %v900, %v901
        %v903 = vrot.slane %v902, 1
        %v904 = vadd.f32 %v902, %v903
        %s905 = vtos %v904
        %v906 = vrcp.pop 128.0
        %v907 = vmul.f32 128.0, %v906
        %v908 = vsub.f32 1.0, %v907
        %v909 = vmul.f32 %v906, %v908
        %v910 = vadd.f32 %v906, %v909
        %vm911 = vweird.f32 %v906
        %v912 = vsel %vm911, %v906, %v910
        %s913 = vtos %v912
        %s914 = smul.f32 %s905, %s913
        %s915 = smul.f32 %s891, %s891
        %s916 = ssub.f32 %s914, %s915
        %s917 = sadd.f32 %s916, 1e-05
        %v918 = vstv %s917
        %v919 = vrsqrt.pop %v918
        %v920 = vmul.f32 %v919, %v918
        %v921 = vmul.f32 %v920, %v919
        %v922 = vmul.f32 0.5, %v921
        %v923 = vsub.f32 1.5, %v922
        %v924 = vmul.f32 %v919, %v923
        %vm925 = vweird.f32 %v918
        %vm926 = vweird.f32 %v919
        %vm927 = vmor %vm925, %vm926
        %v928 = vsel %vm927, %v919, %v924
        %s929 = vtos %v928
        %v930 = vmul.f32 %v866, %v275
        %v931 = vmul.f32 %v869, %v276
        %v932 = vsel %vm279, %v930, 0.0
        %v933 = vsel %vm279, %v931, 0.0
        %v934 = vadd.f32 %v932, %v933
        %v935 = vrot.slane %v934, 4
        %v936 = vadd.f32 %v934, %v935
        %v937 = vrot.slane %v936, 2
        %v938 = vadd.f32 %v936, %v937
        %v939 = vrot.slane %v938, 1
        %v940 = vadd.f32 %v938, %v939
        %v941 = vmul.f32 %v940, %v295
        %v942 = vstv %s891
        %v943 = vmul.f32 %v942, %v296
        %v944 = vsub.f32 %v941, %v943
        %v945 = vstv %s929
        %v946 = vmul.f32 %v945, %v944
        %v947 = vadd.f32 %v946, %v306
        %v949 = vsel %vm279, %v745, 0
        %v952 = vsel %vm279, %v748, 0
        %954 = vmatpush.xpose.msra.mxu0 0.0
        %955 = vmatpush.xpose.msra.mxu0 0.0
        %956 = vmatpush.xpose.msra.mxu0 0.0
        %957 = vmatpush.xpose.msra.mxu0 0.0
        %958 = vmatpush.xpose.msra.mxu0 0.0
        %959 = vmatpush.xpose.msra.mxu0 0.0
        %960 = vmatpush.xpose.msra.mxu0 0.0
        %961 = vmatpush.xpose.msra.mxu0 0.0
        %962 = vmatpush.xpose.msra.mxu0 0.0
        %963 = vmatpush.xpose.msra.mxu0 0.0
        %964 = vmatpush.xpose.msra.mxu0 0.0
        %965 = vmatpush.xpose.msra.mxu0 0.0
        %966 = vmatpush.xpose.msra.mxu0 0.0
        %967 = vmatpush.xpose.msra.mxu0 0.0
        %968 = vmatpush.xpose.msra.mxu0 %v760
        %969 = vmatpush.xpose.msra.mxu0 %v757
        %970 = vmatmul.f32.gmra.mxu0 %v949
        %v971 = vpop.f32.mrf.mxu0
        %v972 = vadd.f32 0.0, %v971
        %973 = vmatmul.f32.gmra.mxu0 %v952
        %v974 = vpop.f32.mrf.mxu0
        %v975 = vadd.f32 0.0, %v974
        %976 = vdwg.mxu0
        %v977 = vsel %vm428, %v972, -inf
        %978 = vmax.xlane.f32.xlu0 %v977
        %v979 = vpop.xlane.xlu0 %978
        %v980 = vsel %vm428, %v975, -inf
        %981 = vmax.xlane.f32.xlu0 %v980
        %v982 = vpop.xlane.xlu0 %981
        %v983 = vsub.f32 %v972, %v979
        %v984 = vsub.f32 %v975, %v982
        %v985 = vmul.f32 %v983, 1.442695
        %v986 = vpow.pop %v985
        %v987 = vmul.f32 %v984, 1.442695
        %v988 = vpow.pop %v987
        %v989 = vsel %vm428, %v986, 0.0
        %990 = vadd.xlane.f32.xlu0 %v989
        %v991 = vpop.xlane.xlu0 %990
        %v992 = vsel %vm428, %v988, 0.0
        %993 = vadd.xlane.f32.xlu0 %v992
        %v994 = vpop.xlane.xlu0 %993
        %v995 = vrcp.pop %v991
        %v996 = vrcp.pop %v994
        %v997 = vmul.f32 %v986, %v995
        %v998 = vmul.f32 %v988, %v996
        %v1000 = vsel %vm428, %v997, 0
        %v1003 = vsel %vm428, %v998, 0
        %1005 = vmatpush.msra.mxu0 0.0
        %1006 = vmatpush.msra.mxu0 0.0
        %1007 = vmatpush.msra.mxu0 0.0
        %1008 = vmatpush.msra.mxu0 0.0
        %1009 = vmatpush.msra.mxu0 0.0
        %1010 = vmatpush.msra.mxu0 0.0
        %1011 = vmatpush.msra.mxu0 0.0
        %1012 = vmatpush.msra.mxu0 0.0
        %1013 = vmatpush.msra.mxu0 0.0
        %1014 = vmatpush.msra.mxu0 0.0
        %1015 = vmatpush.msra.mxu0 0.0
        %1016 = vmatpush.msra.mxu0 0.0
        %1017 = vmatpush.msra.mxu0 0.0
        %1018 = vmatpush.msra.mxu0 0.0
        %1019 = vmatpush.msra.mxu0 %v789
        %1020 = vmatpush.msra.mxu0 %v786
        %1021 = vmatmul.f32.gmra.mxu0 %v1000
        %v1022 = vpop.f32.mrf.mxu0
        %v1023 = vadd.f32 0.0, %v1022
        %1024 = vmatmul.f32.gmra.mxu0 %v1003
        %v1025 = vpop.f32.mrf.mxu0
        %v1026 = vadd.f32 0.0, %v1025
        %1027 = vdwg.mxu0
        %v1028 = vsel %vm279, %v1023, 0.0
        %v1029 = vsel %vm279, %v1026, 0.0
        %v1030 = vadd.f32 %v1028, %v1029
        %1031 = vadd.xlane.f32.xlu0 %v1030
        %v1032 = vpop.xlane.xlu0 %1031
        %v1033 = vrot.slane %v1032, 4
        %v1034 = vadd.f32 %v1032, %v1033
        %v1035 = vrot.slane %v1034, 2
        %v1036 = vadd.f32 %v1034, %v1035
        %v1037 = vrot.slane %v1036, 1
        %v1038 = vadd.f32 %v1036, %v1037
        %s1039 = vtos %v1038
        %v1040 = vrcp.pop 128.0
        %v1041 = vmul.f32 128.0, %v1040
        %v1042 = vsub.f32 1.0, %v1041
        %v1043 = vmul.f32 %v1040, %v1042
        %v1044 = vadd.f32 %v1040, %v1043
        %vm1045 = vweird.f32 %v1040
        %v1046 = vsel %vm1045, %v1040, %v1044
        %s1047 = vtos %v1046
        %s1048 = smul.f32 %s1039, %s1047
        %v1049 = vmul.f32 %v1023, %v1023
        %v1050 = vmul.f32 %v1026, %v1026
        %v1051 = vsel %vm279, %v1049, 0.0
        %v1052 = vsel %vm279, %v1050, 0.0
        %v1053 = vadd.f32 %v1051, %v1052
        %1054 = vadd.xlane.f32.xlu0 %v1053
        %v1055 = vpop.xlane.xlu0 %1054
        %v1056 = vrot.slane %v1055, 4
        %v1057 = vadd.f32 %v1055, %v1056
        %v1058 = vrot.slane %v1057, 2
        %v1059 = vadd.f32 %v1057, %v1058
        %v1060 = vrot.slane %v1059, 1
        %v1061 = vadd.f32 %v1059, %v1060
        %s1062 = vtos %v1061
        %v1063 = vrcp.pop 128.0
        %v1064 = vmul.f32 128.0, %v1063
        %v1065 = vsub.f32 1.0, %v1064
        %v1066 = vmul.f32 %v1063, %v1065
        %v1067 = vadd.f32 %v1063, %v1066
        %vm1068 = vweird.f32 %v1063
        %v1069 = vsel %vm1068, %v1063, %v1067
        %s1070 = vtos %v1069
        %s1071 = smul.f32 %s1062, %s1070
        %s1072 = smul.f32 %s1048, %s1048
        %s1073 = ssub.f32 %s1071, %s1072
        %s1074 = sadd.f32 %s1073, 1e-05
        %v1075 = vstv %s1074
        %v1076 = vrsqrt.pop %v1075
        %v1077 = vmul.f32 %v1076, %v1075
        %v1078 = vmul.f32 %v1077, %v1076
        %v1079 = vmul.f32 0.5, %v1078
        %v1080 = vsub.f32 1.5, %v1079
        %v1081 = vmul.f32 %v1076, %v1080
        %vm1082 = vweird.f32 %v1075
        %vm1083 = vweird.f32 %v1076
        %vm1084 = vmor %vm1082, %vm1083
        %v1085 = vsel %vm1084, %v1076, %v1081
        %s1086 = vtos %v1085
        %v1087 = vmul.f32 %v1023, %v275
        %v1088 = vmul.f32 %v1026, %v276
        %v1089 = vsel %vm279, %v1087, 0.0
        %v1090 = vsel %vm279, %v1088, 0.0
        %v1091 = vadd.f32 %v1089, %v1090
        %v1092 = vrot.slane %v1091, 4
        %v1093 = vadd.f32 %v1091, %v1092
        %v1094 = vrot.slane %v1093, 2
        %v1095 = vadd.f32 %v1093, %v1094
        %v1096 = vrot.slane %v1095, 1
        %v1097 = vadd.f32 %v1095, %v1096
        %v1098 = vmul.f32 %v1097, %v295
        %v1099 = vstv %s1048
        %v1100 = vmul.f32 %v1099, %v296
        %v1101 = vsub.f32 %v1098, %v1100
        %v1102 = vstv %s1086
        %v1103 = vmul.f32 %v1102, %v1101
        %v1104 = vadd.f32 %v1103, %v306
        %v1105 = vld [vmem:[%s2 + $0x10] sm:$0xff]
        %v1106 = vld [vmem:[%s2 + $0x28] sm:$0xff]
        %s1107 = scalar_lea.vmem %s236, 64 [#allocation2]
        %v1108 = vld [vmem:[%s1107] sm:$0xff]
        %v1109 = vld [vmem:[%s1107 + $0x8] sm:$0xff]
        %v1110 = vld [vmem:[%s1107 + $0x10] sm:$0xff]
        %v1111 = vld [vmem:[%s1107 + $0x18] sm:$0xff]
        %1112 = vmatpush.msra.mxu0 0.0
        %1113 = vmatpush.msra.mxu0 0.0
        %1114 = vmatpush.msra.mxu0 0.0
        %1115 = vmatpush.msra.mxu0 0.0
        %1116 = vmatpush.msra.mxu0 0.0
        %1117 = vmatpush.msra.mxu0 0.0
        %1118 = vmatpush.msra.mxu0 0.0
        %1119 = vmatpush.msra.mxu0 0.0
        %1120 = vmatpush.msra.mxu0 0.0
        %1121 = vmatpush.msra.mxu0 0.0
        %1122 = vmatpush.msra.mxu0 0.0
        %1123 = vmatpush.msra.mxu0 0.0
        %1124 = vmatpush.msra.mxu0 0.0
        %1125 = vmatpush.msra.mxu0 0.0
        %1126 = vmatpush.msra.mxu0 0.0
        %1127 = vmatpush.msra.mxu0 %v1105
        %1128 = vmatmul.f32.gmra.mxu0 %v318
        %v1129 = vpop.f32.mrf.mxu0
        %v1130 = vadd.f32 0.0, %v1129
        %1131 = vmatmul.f32.gmra.mxu0 %v321
        %v1132 = vpop.f32.mrf.mxu0
        %v1133 = vadd.f32 0.0, %v1132
        %1134 = vmatmul.f32.gmra.mxu0 %v324
        %v1135 = vpop.f32.mrf.mxu0
        %v1136 = vadd.f32 0.0, %v1135
        %1137 = vmatmul.f32.gmra.mxu0 %v327
        %v1138 = vpop.f32.mrf.mxu0
        %v1139 = vadd.f32 0.0, %v1138
        %1140 = vdwg.mxu0
        %v1142 = vsel %vm279, %v1108, 0
        %v1145 = vsel %vm279, %v1109, 0
        %v1148 = vsel %vm279, %v1110, 0
        %v1151 = vsel %vm279, %v1111, 0
        %1153 = vmatpush.msra.mxu0 0.0
        %1154 = vmatpush.msra.mxu0 0.0
        %1155 = vmatpush.msra.mxu0 0.0
        %1156 = vmatpush.msra.mxu0 0.0
        %1157 = vmatpush.msra.mxu0 0.0
        %1158 = vmatpush.msra.mxu0 0.0
        %1159 = vmatpush.msra.mxu0 0.0
        %1160 = vmatpush.msra.mxu0 0.0
        %1161 = vmatpush.msra.mxu0 0.0
        %1162 = vmatpush.msra.mxu0 0.0
        %1163 = vmatpush.msra.mxu0 0.0
        %1164 = vmatpush.msra.mxu0 0.0
        %1165 = vmatpush.msra.mxu0 0.0
        %1166 = vmatpush.msra.mxu0 0.0
        %1167 = vmatpush.msra.mxu0 0.0
        %1168 = vmatpush.msra.mxu0 %v1106
        %1169 = vmatmul.f32.gmra.mxu0 %v1142
        %v1170 = vpop.f32.mrf.mxu0
        %v1171 = vadd.f32 0.0, %v1170
        %1172 = vmatmul.f32.gmra.mxu0 %v1145
        %v1173 = vpop.f32.mrf.mxu0
        %v1174 = vadd.f32 0.0, %v1173
        %1175 = vmatmul.f32.gmra.mxu0 %v1148
        %v1176 = vpop.f32.mrf.mxu0
        %v1177 = vadd.f32 0.0, %v1176
        %1178 = vmatmul.f32.gmra.mxu0 %v1151
        %v1179 = vpop.f32.mrf.mxu0
        %v1180 = vadd.f32 0.0, %v1179
        %1181 = vdwg.mxu0
        %v1183 = vsel %vm279, %v1130, 0
        %v1186 = vsel %vm279, %v1133, 0
        %1188 = vmatpush.xpose.msra.mxu0 0.0
        %1189 = vmatpush.xpose.msra.mxu0 0.0
        %1190 = vmatpush.xpose.msra.mxu0 0.0
        %1191 = vmatpush.xpose.msra.mxu0 0.0
        %1192 = vmatpush.xpose.msra.mxu0 0.0
        %1193 = vmatpush.xpose.msra.mxu0 0.0
        %1194 = vmatpush.xpose.msra.mxu0 0.0
        %1195 = vmatpush.xpose.msra.mxu0 0.0
        %1196 = vmatpush.xpose.msra.mxu0 0.0
        %1197 = vmatpush.xpose.msra.mxu0 0.0
        %1198 = vmatpush.xpose.msra.mxu0 0.0
        %1199 = vmatpush.xpose.msra.mxu0 0.0
        %1200 = vmatpush.xpose.msra.mxu0 0.0
        %1201 = vmatpush.xpose.msra.mxu0 0.0
        %1202 = vmatpush.xpose.msra.mxu0 %v1145
        %1203 = vmatpush.xpose.msra.mxu0 %v1142
        %1204 = vmatmul.f32.gmra.mxu0 %v1183
        %v1205 = vpop.f32.mrf.mxu0
        %v1206 = vadd.f32 0.0, %v1205
        %1207 = vmatmul.f32.gmra.mxu0 %v1186
        %v1208 = vpop.f32.mrf.mxu0
        %v1209 = vadd.f32 0.0, %v1208
        %1210 = vdwg.mxu0
        %v1211 = vsel %vm428, %v1206, -inf
        %1212 = vmax.xlane.f32.xlu0 %v1211
        %v1213 = vpop.xlane.xlu0 %1212
        %v1214 = vsel %vm428, %v1209, -inf
        %1215 = vmax.xlane.f32.xlu0 %v1214
        %v1216 = vpop.xlane.xlu0 %1215
        %v1217 = vsub.f32 %v1206, %v1213
        %v1218 = vsub.f32 %v1209, %v1216
        %v1219 = vmul.f32 %v1217, 1.442695
        %v1220 = vpow.pop %v1219
        %v1221 = vmul.f32 %v1218, 1.442695
        %v1222 = vpow.pop %v1221
        %v1223 = vsel %vm428, %v1220, 0.0
        %1224 = vadd.xlane.f32.xlu0 %v1223
        %v1225 = vpop.xlane.xlu0 %1224
        %v1226 = vsel %vm428, %v1222, 0.0
        %1227 = vadd.xlane.f32.xlu0 %v1226
        %v1228 = vpop.xlane.xlu0 %1227
        %v1229 = vrcp.pop %v1225
        %v1230 = vrcp.pop %v1228
        %v1231 = vmul.f32 %v1220, %v1229
        %v1232 = vmul.f32 %v1222, %v1230
        %v1234 = vsel %vm428, %v1231, 0
        %v1237 = vsel %vm428, %v1232, 0
        %1239 = vmatpush.msra.mxu0 0.0
        %1240 = vmatpush.msra.mxu0 0.0
        %1241 = vmatpush.msra.mxu0 0.0
        %1242 = vmatpush.msra.mxu0 0.0
        %1243 = vmatpush.msra.mxu0 0.0
        %1244 = vmatpush.msra.mxu0 0.0
        %1245 = vmatpush.msra.mxu0 0.0
        %1246 = vmatpush.msra.mxu0 0.0
        %1247 = vmatpush.msra.mxu0 0.0
        %1248 = vmatpush.msra.mxu0 0.0
        %1249 = vmatpush.msra.mxu0 0.0
        %1250 = vmatpush.msra.mxu0 0.0
        %1251 = vmatpush.msra.mxu0 0.0
        %1252 = vmatpush.msra.mxu0 0.0
        %1253 = vmatpush.msra.mxu0 %v1174
        %1254 = vmatpush.msra.mxu0 %v1171
        %1255 = vmatmul.f32.gmra.mxu0 %v1234
        %v1256 = vpop.f32.mrf.mxu0
        %v1257 = vadd.f32 0.0, %v1256
        %1258 = vmatmul.f32.gmra.mxu0 %v1237
        %v1259 = vpop.f32.mrf.mxu0
        %v1260 = vadd.f32 0.0, %v1259
        %1261 = vdwg.mxu0
        %v1262 = vsel %vm279, %v1257, 0.0
        %v1263 = vsel %vm279, %v1260, 0.0
        %v1264 = vadd.f32 %v1262, %v1263
        %1265 = vadd.xlane.f32.xlu0 %v1264
        %v1266 = vpop.xlane.xlu0 %1265
        %v1267 = vrot.slane %v1266, 4
        %v1268 = vadd.f32 %v1266, %v1267
        %v1269 = vrot.slane %v1268, 2
        %v1270 = vadd.f32 %v1268, %v1269
        %v1271 = vrot.slane %v1270, 1
        %v1272 = vadd.f32 %v1270, %v1271
        %s1273 = vtos %v1272
        %v1274 = vrcp.pop 128.0
        %v1275 = vmul.f32 128.0, %v1274
        %v1276 = vsub.f32 1.0, %v1275
        %v1277 = vmul.f32 %v1274, %v1276
        %v1278 = vadd.f32 %v1274, %v1277
        %vm1279 = vweird.f32 %v1274
        %v1280 = vsel %vm1279, %v1274, %v1278
        %s1281 = vtos %v1280
        %s1282 = smul.f32 %s1273, %s1281
        %v1283 = vmul.f32 %v1257, %v1257
        %v1284 = vmul.f32 %v1260, %v1260
        %v1285 = vsel %vm279, %v1283, 0.0
        %v1286 = vsel %vm279, %v1284, 0.0
        %v1287 = vadd.f32 %v1285, %v1286
        %1288 = vadd.xlane.f32.xlu0 %v1287
        %v1289 = vpop.xlane.xlu0 %1288
        %v1290 = vrot.slane %v1289, 4
        %v1291 = vadd.f32 %v1289, %v1290
        %v1292 = vrot.slane %v1291, 2
        %v1293 = vadd.f32 %v1291, %v1292
        %v1294 = vrot.slane %v1293, 1
        %v1295 = vadd.f32 %v1293, %v1294
        %s1296 = vtos %v1295
        %v1297 = vrcp.pop 128.0
        %v1298 = vmul.f32 128.0, %v1297
        %v1299 = vsub.f32 1.0, %v1298
        %v1300 = vmul.f32 %v1297, %v1299
        %v1301 = vadd.f32 %v1297, %v1300
        %vm1302 = vweird.f32 %v1297
        %v1303 = vsel %vm1302, %v1297, %v1301
        %s1304 = vtos %v1303
        %s1305 = smul.f32 %s1296, %s1304
        %s1306 = smul.f32 %s1282, %s1282
        %s1307 = ssub.f32 %s1305, %s1306
        %s1308 = sadd.f32 %s1307, 1e-05
        %v1309 = vstv %s1308
        %v1310 = vrsqrt.pop %v1309
        %v1311 = vmul.f32 %v1310, %v1309
        %v1312 = vmul.f32 %v1311, %v1310
        %v1313 = vmul.f32 0.5, %v1312
        %v1314 = vsub.f32 1.5, %v1313
        %v1315 = vmul.f32 %v1310, %v1314
        %vm1316 = vweird.f32 %v1309
        %vm1317 = vweird.f32 %v1310
        %vm1318 = vmor %vm1316, %vm1317
        %v1319 = vsel %vm1318, %v1310, %v1315
        %s1320 = vtos %v1319
        %v1321 = vmul.f32 %v1257, %v275
        %v1322 = vmul.f32 %v1260, %v276
        %v1323 = vsel %vm279, %v1321, 0.0
        %v1324 = vsel %vm279, %v1322, 0.0
        %v1325 = vadd.f32 %v1323, %v1324
        %v1326 = vrot.slane %v1325, 4
        %v1327 = vadd.f32 %v1325, %v1326
        %v1328 = vrot.slane %v1327, 2
        %v1329 = vadd.f32 %v1327, %v1328
        %v1330 = vrot.slane %v1329, 1
        %v1331 = vadd.f32 %v1329, %v1330
        %v1332 = vmul.f32 %v1331, %v295
        %v1333 = vstv %s1282
        %v1334 = vmul.f32 %v1333, %v296
        %v1335 = vsub.f32 %v1332, %v1334
        %v1336 = vstv %s1320
        %v1337 = vmul.f32 %v1336, %v1335
        %v1338 = vadd.f32 %v1337, %v306
        %v1340 = vsel %vm279, %v1136, 0
        %v1343 = vsel %vm279, %v1139, 0
        %1345 = vmatpush.xpose.msra.mxu0 0.0
        %1346 = vmatpush.xpose.msra.mxu0 0.0
        %1347 = vmatpush.xpose.msra.mxu0 0.0
        %1348 = vmatpush.xpose.msra.mxu0 0.0
        %1349 = vmatpush.xpose.msra.mxu0 0.0
        %1350 = vmatpush.xpose.msra.mxu0 0.0
        %1351 = vmatpush.xpose.msra.mxu0 0.0
        %1352 = vmatpush.xpose.msra.mxu0 0.0
        %1353 = vmatpush.xpose.msra.mxu0 0.0
        %1354 = vmatpush.xpose.msra.mxu0 0.0
        %1355 = vmatpush.xpose.msra.mxu0 0.0
        %1356 = vmatpush.xpose.msra.mxu0 0.0
        %1357 = vmatpush.xpose.msra.mxu0 0.0
        %1358 = vmatpush.xpose.msra.mxu0 0.0
        %1359 = vmatpush.xpose.msra.mxu0 %v1151
        %1360 = vmatpush.xpose.msra.mxu0 %v1148
        %1361 = vmatmul.f32.gmra.mxu0 %v1340
        %v1362 = vpop.f32.mrf.mxu0
        %v1363 = vadd.f32 0.0, %v1362
        %1364 = vmatmul.f32.gmra.mxu0 %v1343
        %v1365 = vpop.f32.mrf.mxu0
        %v1366 = vadd.f32 0.0, %v1365
        %1367 = vdwg.mxu0
        %v1368 = vsel %vm428, %v1363, -inf
        %1369 = vmax.xlane.f32.xlu0 %v1368
        %v1370 = vpop.xlane.xlu0 %1369
        %v1371 = vsel %vm428, %v1366, -inf
        %1372 = vmax.xlane.f32.xlu0 %v1371
        %v1373 = vpop.xlane.xlu0 %1372
        %v1374 = vsub.f32 %v1363, %v1370
        %v1375 = vsub.f32 %v1366, %v1373
        %v1376 = vmul.f32 %v1374, 1.442695
        %v1377 = vpow.pop %v1376
        %v1378 = vmul.f32 %v1375, 1.442695
        %v1379 = vpow.pop %v1378
        %v1380 = vsel %vm428, %v1377, 0.0
        %1381 = vadd.xlane.f32.xlu0 %v1380
        %v1382 = vpop.xlane.xlu0 %1381
        %v1383 = vsel %vm428, %v1379, 0.0
        %1384 = vadd.xlane.f32.xlu0 %v1383
        %v1385 = vpop.xlane.xlu0 %1384
        %v1386 = vrcp.pop %v1382
        %v1387 = vrcp.pop %v1385
        %v1388 = vmul.f32 %v1377, %v1386
        %v1389 = vmul.f32 %v1379, %v1387
        %v1391 = vsel %vm428, %v1388, 0
        %v1394 = vsel %vm428, %v1389, 0
        %1396 = vmatpush.msra.mxu0 0.0
        %1397 = vmatpush.msra.mxu0 0.0
        %1398 = vmatpush.msra.mxu0 0.0
        %1399 = vmatpush.msra.mxu0 0.0
        %1400 = vmatpush.msra.mxu0 0.0
        %1401 = vmatpush.msra.mxu0 0.0
        %1402 = vmatpush.msra.mxu0 0.0
        %1403 = vmatpush.msra.mxu0 0.0
        %1404 = vmatpush.msra.mxu0 0.0
        %1405 = vmatpush.msra.mxu0 0.0
        %1406 = vmatpush.msra.mxu0 0.0
        %1407 = vmatpush.msra.mxu0 0.0
        %1408 = vmatpush.msra.mxu0 0.0
        %1409 = vmatpush.msra.mxu0 0.0
        %1410 = vmatpush.msra.mxu0 %v1180
        %1411 = vmatpush.msra.mxu0 %v1177
        %1412 = vmatmul.f32.gmra.mxu0 %v1391
        %v1413 = vpop.f32.mrf.mxu0
        %v1414 = vadd.f32 0.0, %v1413
        %1415 = vmatmul.f32.gmra.mxu0 %v1394
        %v1416 = vpop.f32.mrf.mxu0
        %v1417 = vadd.f32 0.0, %v1416
        %1418 = vdwg.mxu0
        %v1419 = vsel %vm279, %v1414, 0.0
        %v1420 = vsel %vm279, %v1417, 0.0
        %v1421 = vadd.f32 %v1419, %v1420
        %1422 = vadd.xlane.f32.xlu0 %v1421
        %v1423 = vpop.xlane.xlu0 %1422
        %v1424 = vrot.slane %v1423, 4
        %v1425 = vadd.f32 %v1423, %v1424
        %v1426 = vrot.slane %v1425, 2
        %v1427 = vadd.f32 %v1425, %v1426
        %v1428 = vrot.slane %v1427, 1
        %v1429 = vadd.f32 %v1427, %v1428
        %s1430 = vtos %v1429
        %v1431 = vrcp.pop 128.0
        %v1432 = vmul.f32 128.0, %v1431
        %v1433 = vsub.f32 1.0, %v1432
        %v1434 = vmul.f32 %v1431, %v1433
        %v1435 = vadd.f32 %v1431, %v1434
        %vm1436 = vweird.f32 %v1431
        %v1437 = vsel %vm1436, %v1431, %v1435
        %s1438 = vtos %v1437
        %s1439 = smul.f32 %s1430, %s1438
        %v1440 = vmul.f32 %v1414, %v1414
        %v1441 = vmul.f32 %v1417, %v1417
        %v1442 = vsel %vm279, %v1440, 0.0
        %v1443 = vsel %vm279, %v1441, 0.0
        %v1444 = vadd.f32 %v1442, %v1443
        %1445 = vadd.xlane.f32.xlu0 %v1444
        %v1446 = vpop.xlane.xlu0 %1445
        %v1447 = vrot.slane %v1446, 4
        %v1448 = vadd.f32 %v1446, %v1447
        %v1449 = vrot.slane %v1448, 2
        %v1450 = vadd.f32 %v1448, %v1449
        %v1451 = vrot.slane %v1450, 1
        %v1452 = vadd.f32 %v1450, %v1451
        %s1453 = vtos %v1452
        %v1454 = vrcp.pop 128.0
        %v1455 = vmul.f32 128.0, %v1454
        %v1456 = vsub.f32 1.0, %v1455
        %v1457 = vmul.f32 %v1454, %v1456
        %v1458 = vadd.f32 %v1454, %v1457
        %vm1459 = vweird.f32 %v1454
        %v1460 = vsel %vm1459, %v1454, %v1458
        %s1461 = vtos %v1460
        %s1462 = smul.f32 %s1453, %s1461
        %s1463 = smul.f32 %s1439, %s1439
        %s1464 = ssub.f32 %s1462, %s1463
        %s1465 = sadd.f32 %s1464, 1e-05
        %v1466 = vstv %s1465
        %v1467 = vrsqrt.pop %v1466
        %v1468 = vmul.f32 %v1467, %v1466
        %v1469 = vmul.f32 %v1468, %v1467
        %v1470 = vmul.f32 0.5, %v1469
        %v1471 = vsub.f32 1.5, %v1470
        %v1472 = vmul.f32 %v1467, %v1471
        %vm1473 = vweird.f32 %v1466
        %vm1474 = vweird.f32 %v1467
        %vm1475 = vmor %vm1473, %vm1474
        %v1476 = vsel %vm1475, %v1467, %v1472
        %s1477 = vtos %v1476
        %v1478 = vmul.f32 %v1414, %v275
        %v1479 = vmul.f32 %v1417, %v276
        %v1480 = vsel %vm279, %v1478, 0.0
        %v1481 = vsel %vm279, %v1479, 0.0
        %v1482 = vadd.f32 %v1480, %v1481
        %v1483 = vrot.slane %v1482, 4
        %v1484 = vadd.f32 %v1482, %v1483
        %v1485 = vrot.slane %v1484, 2
        %v1486 = vadd.f32 %v1484, %v1485
        %v1487 = vrot.slane %v1486, 1
        %v1488 = vadd.f32 %v1486, %v1487
        %v1489 = vmul.f32 %v1488, %v295
        %v1490 = vstv %s1439
        %v1491 = vmul.f32 %v1490, %v296
        %v1492 = vsub.f32 %v1489, %v1491
        %v1493 = vstv %s1477
        %v1494 = vmul.f32 %v1493, %v1492
        %v1495 = vadd.f32 %v1494, %v306
        %v1496 = vmax.f32 %v556, %v947
        %v1497 = vmax.f32 %v1496, %v1338
        %v1498 = vsub.f32 %v556, %v1497
        %v1499 = vmul.f32 %v1498, 1.442695
        %v1500 = vpow.pop %v1499
        %v1501 = vsub.f32 %v947, %v1497
        %v1502 = vmul.f32 %v1501, 1.442695
        %v1503 = vpow.pop %v1502
        %v1504 = vsub.f32 %v1338, %v1497
        %v1505 = vmul.f32 %v1504, 1.442695
        %v1506 = vpow.pop %v1505
        %v1507 = vadd.f32 %v1500, %v1503
        %v1508 = vadd.f32 %v1507, %v1506
        %v1509 = vrcp.pop %v1508
        %v1510 = vmul.f32 %v1500, %v1509
        %v1511 = vld [vmem:[%s236] sm:$0xff]
        %v1512 = vld [vmem:[%s236 + $0x8] sm:$0xff]
        %v1513 = vmul.f32 %v1510, %v1511
        %v1514 = vmul.f32 %v1510, %v1512
        %v1515 = vmul.f32 %v1503, %v1509
        %v1516 = vld [vmem:[%s716] sm:$0xff]
        %v1517 = vld [vmem:[%s716 + $0x8] sm:$0xff]
        %v1518 = vmul.f32 %v1515, %v1516
        %v1519 = vmul.f32 %v1515, %v1517
        %v1520 = vadd.f32 %v1513, %v1518
        %v1521 = vadd.f32 %v1514, %v1519
        %v1522 = vmul.f32 %v1506, %v1509
        %v1523 = vld [vmem:[%s1107] sm:$0xff]
        %v1524 = vld [vmem:[%s1107 + $0x8] sm:$0xff]
        %v1525 = vmul.f32 %v1522, %v1523
        %v1526 = vmul.f32 %v1522, %v1524
        %v1527 = vadd.f32 %v1520, %v1525
        %v1528 = vadd.f32 %v1521, %v1526
        %1529 = vst.msk [vmem:[%s273] sm:$0xff] %vm279, %v1527
        %1530 = vst.msk [vmem:[%s273 + $0x8] sm:$0xff] %vm279, %v1528
        %v1531 = vmax.f32 %v713, %v1104
        %v1532 = vmax.f32 %v1531, %v1495
        %v1533 = vsub.f32 %v713, %v1532
        %v1534 = vmul.f32 %v1533, 1.442695
        %v1535 = vpow.pop %v1534
        %v1536 = vsub.f32 %v1104, %v1532
        %v1537 = vmul.f32 %v1536, 1.442695
        %v1538 = vpow.pop %v1537
        %v1539 = vsub.f32 %v1495, %v1532
        %v1540 = vmul.f32 %v1539, 1.442695
        %v1541 = vpow.pop %v1540
        %v1542 = vadd.f32 %v1535, %v1538
        %v1543 = vadd.f32 %v1542, %v1541
        %v1544 = vrcp.pop %v1543
        %v1545 = vmul.f32 %v1535, %v1544
        %v1546 = vld [vmem:[%s236 + $0x10] sm:$0xff]
        %v1547 = vld [vmem:[%s236 + $0x18] sm:$0xff]
        %v1548 = vmul.f32 %v1545, %v1546
        %v1549 = vmul.f32 %v1545, %v1547
        %v1550 = vmul.f32 %v1538, %v1544
        %v1551 = vld [vmem:[%s716 + $0x10] sm:$0xff]
        %v1552 = vld [vmem:[%s716 + $0x18] sm:$0xff]
        %v1553 = vmul.f32 %v1550, %v1551
        %v1554 = vmul.f32 %v1550, %v1552
        %v1555 = vadd.f32 %v1548, %v1553
        %v1556 = vadd.f32 %v1549, %v1554
        %v1557 = vmul.f32 %v1541, %v1544
        %v1558 = vld [vmem:[%s1107 + $0x10] sm:$0xff]
        %v1559 = vld [vmem:[%s1107 + $0x18] sm:$0xff]
        %v1560 = vmul.f32 %v1557, %v1558
        %v1561 = vmul.f32 %v1557, %v1559
        %v1562 = vadd.f32 %v1555, %v1560
        %v1563 = vadd.f32 %v1556, %v1561
        %1564 = vst.msk [vmem:[%s273 + $0x10] sm:$0xff] %vm279, %v1562
        %1565 = vst.msk [vmem:[%s273 + $0x18] sm:$0xff] %vm279, %v1563
        %s1566 = smul.u32 4, %s14
        %p1567 = scmp.lt.s32.totalorder %s1566, 15
        %s1568 = scalar_select %p1567, %s1566, 15
        %s1569 = smul.addr %s1568, 8
        %s1570 = scalar_lea.vmem %s3, %s1569
        // Predicated region
        $region71: #{tpu_custom_call.1} parent=65 // pred_check
          %p1571 = pneg %p105
        $region72: #{tpu_custom_call.1} parent=65 // pred_check_branch
          %1573 = sbr.rel (%p1571) target = $region74
        $region73: #{tpu_custom_call.1} parent=65 // pred_region
          %s1574 = smul.u32 4, %s14
        $region74: #{tpu_custom_call.1} parent=65 // pred_fallthru
          _
      $region66: #{tpu_custom_call.1} parent=5 // pred_fallthru
        _
      %p1575 = scmp.le.s32.totalorder 2, %s9
      // Predicated region
      $region75: #{tpu_custom_call.1} parent=5 // pred_check
        %p1576 = pneg %p1575
      $region76: #{tpu_custom_call.1} parent=5 // pred_check_branch
        %1578 = sbr.rel (%p1576) target = $region78
      $region77: #{tpu_custom_call.1} parent=5 // pred_region
        %s1579 = ssub.s32 %s9, 2
        // Predicated region
        $region79: #{tpu_custom_call.1} parent=77 // pred_check
          %p1580 = pneg %p111
        $region80: #{tpu_custom_call.1} parent=77 // pred_check_branch
          %1582 = sbr.rel (%p1580) target = $region82
        $region81: #{tpu_custom_call.1} parent=77 // pred_region
          %s1583 = smul.u32 4, %s15
          %p1584 = scmp.lt.s32.totalorder %s1583, 15
          %s1585 = scalar_select %p1584, %s1583, 15
          %s1586 = smul.addr %s1585, 8
          %s1587 = scalar_lea.vmem %s3, %s1586
        $region82: #{tpu_custom_call.1} parent=77 // pred_fallthru
          _
      $region78: #{tpu_custom_call.1} parent=5 // pred_fallthru
        _
    $region6: #{tpu_custom_call.1} parent=1 // loop_footer
      %s13 = sadd.s32 1, %s9
    $region7: #{tpu_custom_call.1} parent=1 // loop_footer_branch
      %8 = sbr.rel target = $region3
    $region8: #{tpu_custom_call.1} parent=1 // loop_exit
      _

</llo_original>
